<compile_context>
chip_gen: v7x
topology: tpu7x:2x2x1
jax: 0.10.0
libtpu: 0.0.40
codegen_flags: <defaults>
</compile_context>

<pallas_src>
import functools
import math

import jax
import jax.numpy as jnp
import numpy as np
from jax.experimental import pallas as pl
from jax.experimental.pallas import tpu as pltpu


def hymba_kernel(
    mem_ref, coh_ref, pe_ref, decay_ref,
    wc_ref, bc_ref, wt_ref, bt_ref, wh_ref, bh_ref,
    cons_ref, think_ref, pred_ref, plan_ref,
    *, num_layers: int, thinking_steps: int, dout: int,
):
    bf16 = jnp.bfloat16

    # ---- memory_consolidation_step --------------------------------------
    # memory_tokens + positional_encoding[:S]   (pe already tiled per row)
    state = mem_ref[...] + pe_ref[...]                       # (M, D) f32
    for l in range(num_layers):
        z = jnp.dot(state.astype(bf16), wc_ref[l],           # bf16 MXU, f32 acc
                    preferred_element_type=jnp.float32) + bc_ref[l]
        state = jnp.maximum(z, 0.0)                          # relu in f32
    # present-token (coherence) influence
    state = state * (1.0 + jnp.tanh(coh_ref[...]))
    cons_ref[...] = state

    # ---- thinking_step, repeated `thinking_steps` times ------------------
    decay = decay_ref[...]                                   # (M, H) f32, pre-broadcast
    cur = state
    for _ in range(thinking_steps):
        for l in range(num_layers):
            z = jnp.dot((cur * decay).astype(bf16), wt_ref[l],
                        preferred_element_type=jnp.float32) + bt_ref[l]
            cur = jnp.tanh(z)                                # tanh in f32 (EUP)
    think_ref[...] = cur

    # ---- fused prediction / planning heads: one (M,H) x (H,2*Dout) matmul
    heads = jnp.dot(cur.astype(bf16), wh_ref[...],
                    preferred_element_type=jnp.float32) + bh_ref[...]
    pred_ref[...] = heads[:, :dout]
    plan_ref[...] = heads[:, dout:]


def _num_m_tiles() -> int:
    """2-way parallel M split on v7x (2 TensorCores/chip); 1 tile elsewhere."""
    try:
        kind = jax.devices()[0].device_kind.lower()
    except Exception:
        return 1
    return 2 if "v7" in kind else 1


def hymba_forward(mem, coh, pe, decay, wc, bc, wt, bt, wp, bp, wq, bq,
                  *, thinking_steps: int, m_tiles: int | None = None):
    B, S, D = mem.shape
    L, _, H = wc.shape
    Dout = wp.shape[1]
    M = B * S

    if m_tiles is None:
        m_tiles = _num_m_tiles()
    quantum = 8 * m_tiles                       # sublane (8) alignment per tile
    M_pad = ((M + quantum - 1) // quantum) * quantum
    tile_m = M_pad // m_tiles

    def pad_rows(x):
        return jnp.pad(x, ((0, M_pad - M), (0, 0))) if M_pad != M else x

    # Fold batch into the matmul M dimension.
    mem2 = pad_rows(mem.reshape(M, D))
    coh2 = pad_rows(coh.reshape(M, H))
    pe_rows = pad_rows(jnp.tile(pe, (B, 1)))                               # (M_pad, D)
    decay_rows = pad_rows(jnp.tile(jnp.broadcast_to(decay, (S, H)), (B, 1)))  # (M_pad, H)

    # bf16 matmul operands (weights); biases stay f32 (added post-accumulate).
    bf16 = jnp.bfloat16
    wc_b = wc.astype(bf16)
    wt_b = wt.astype(bf16)
    wh_b = jnp.concatenate([wp, wq], axis=1).astype(bf16)    # (H, 2*Dout) fused heads
    bh = jnp.concatenate([bp, bq], axis=1)                   # (1, 2*Dout)  f32

    kernel = functools.partial(
        hymba_kernel, num_layers=L, thinking_steps=thinking_steps, dout=Dout)

    def row_spec(width):
        return pl.BlockSpec((tile_m, width), lambda i: (i, 0))

    def const_spec(shape):
        return pl.BlockSpec(shape, lambda i: (0,) * len(shape))

    outs = pl.pallas_call(
        kernel,
        grid=(m_tiles,),
        in_specs=[
            row_spec(D),                 # memory tokens        (M_pad, D)
            row_spec(H),                 # coherence tokens     (M_pad, H)
            row_spec(D),                 # positional encoding  (M_pad, D)
            row_spec(H),                 # decay (pre-broadcast)(M_pad, H)
            const_spec((L, D, H)),       # consolidation weights (bf16)
            const_spec((L, 1, H)),       # consolidation biases  (f32)
            const_spec((L, H, H)),       # thinking weights      (bf16)
            const_spec((L, 1, H)),       # thinking biases       (f32)
            const_spec((H, 2 * Dout)),   # fused pred|plan weight (bf16)
            const_spec((1, 2 * Dout)),   # fused pred|plan bias   (f32)
        ],
        out_specs=[
            row_spec(H),                 # consolidated_tokens
            row_spec(H),                 # thinking_tokens
            row_spec(Dout),              # prediction_tokens
            row_spec(Dout),              # planning_tokens
        ],
        out_shape=(
            jax.ShapeDtypeStruct((M_pad, H), jnp.float32),
            jax.ShapeDtypeStruct((M_pad, H), jnp.float32),
            jax.ShapeDtypeStruct((M_pad, Dout), jnp.float32),
            jax.ShapeDtypeStruct((M_pad, Dout), jnp.float32),
        ),
        compiler_params=pltpu.CompilerParams(
            dimension_semantics=("parallel",)),
    )(mem2, coh2, pe_rows, decay_rows, wc_b, bc, wt_b, bt, wh_b, bh)

    def unfold(x, width):
        return x[:M].reshape(B, S, width)

    return {
        "consolidated_tokens": unfold(outs[0], H),
        "thinking_tokens": unfold(outs[1], H),
        "prediction_tokens": unfold(outs[2], Dout),
        "planning_tokens": unfold(outs[3], Dout),
    }


def make_positional_encoding(max_len: int, dim: int) -> jnp.ndarray:
    position = jnp.arange(max_len, dtype=jnp.float32)[:, None]
    div_term = jnp.exp(
        jnp.arange(0, dim, 2, dtype=jnp.float32) * (-math.log(10000.0) / dim))
    pe = jnp.zeros((max_len, dim), dtype=jnp.float32)
    pe = pe.at[:, 0::2].set(jnp.sin(position * div_term))
    pe = pe.at[:, 1::2].set(jnp.cos(position * div_term))
    return pe


def reference_forward(mem, coh, pe, decay, wc, bc, wt, bt, wp, bp, wq, bq,
                      *, thinking_steps: int):
    """Pure-JAX reference mirroring the module semantics and the kernel's
    precision policy (bf16 matmul operands, f32 accumulation & elementwise)."""
    bf16, f32 = jnp.bfloat16, jnp.float32
    state = mem + pe[None]                                   # (B,S,D)
    for l in range(wc.shape[0]):
        z = jnp.einsum("bsd,dh->bsh", state.astype(bf16), wc[l].astype(bf16),
                       preferred_element_type=f32) + bc[l]
        state = jnp.maximum(z, 0.0)
    state = state * (1.0 + jnp.tanh(coh))
    consolidated = state
    cur = consolidated
    for _ in range(thinking_steps):
        for l in range(wt.shape[0]):
            z = jnp.einsum("bsh,hk->bsk", (cur * decay[None]).astype(bf16),
                           wt[l].astype(bf16), preferred_element_type=f32) + bt[l]
            cur = jnp.tanh(z)
    wh = jnp.concatenate([wp, wq], axis=1).astype(bf16)
    bh = jnp.concatenate([bp, bq], axis=1)
    heads = jnp.einsum("bsh,hd->bsd", cur.astype(bf16), wh,
                       preferred_element_type=f32) + bh
    Dout = wp.shape[1]
    return consolidated, cur, heads[..., :Dout], heads[..., Dout:]


if __name__ == "__main__":
    # Small, TPU-tile-friendly shapes (input_dim == hidden_dim, see note above).
    B, S = 2, 8
    INPUT_DIM = 128
    HIDDEN_DIM = 128
    NUM_LAYERS = 4
    COMPUTE_BUDGET = 1.0
    # compute_budget -> thinking_steps is resolved statically (Python int).
    THINKING_STEPS = int(max(0.0, min(1.0, COMPUTE_BUDGET)) * 4)

    key = jax.random.PRNGKey(0)
    keys = jax.random.split(key, 8)

    memory_tokens = jax.random.normal(keys[0], (B, S, INPUT_DIM), jnp.float32)
    coherence_tokens = jax.random.normal(keys[1], (B, S, HIDDEN_DIM), jnp.float32)

    # Deterministic parameter init (synthetic weights, not a checkpoint).
    wc = 0.05 * jax.random.normal(
        keys[2], (NUM_LAYERS, INPUT_DIM, HIDDEN_DIM), jnp.float32)
    bc = 0.01 * jax.random.normal(
        keys[3], (NUM_LAYERS, 1, HIDDEN_DIM), jnp.float32)
    wt = 0.05 * jax.random.normal(
        keys[4], (NUM_LAYERS, HIDDEN_DIM, HIDDEN_DIM), jnp.float32)
    bt = 0.01 * jax.random.normal(
        keys[5], (NUM_LAYERS, 1, HIDDEN_DIM), jnp.float32)
    wp = 0.05 * jax.random.normal(keys[6], (HIDDEN_DIM, INPUT_DIM), jnp.float32)
    bp = jnp.zeros((1, INPUT_DIM), jnp.float32)
    wq = 0.05 * jax.random.normal(keys[7], (HIDDEN_DIM, INPUT_DIM), jnp.float32)
    bq = jnp.zeros((1, INPUT_DIM), jnp.float32)

    pe = make_positional_encoding(S, INPUT_DIM)                    # pe[:S]
    decay = jnp.exp(
        -jnp.arange(S, dtype=jnp.float32) / float(S))[:, None]     # (S, 1)

    out = hymba_forward(
        memory_tokens, coherence_tokens, pe, decay,
        wc, bc, wt, bt, wp, bp, wq, bq,
        thinking_steps=THINKING_STEPS)
    jax.block_until_ready(out)

    ref_cons, ref_think, ref_pred, ref_plan = reference_forward(
        memory_tokens, coherence_tokens, pe, decay,
        wc, bc, wt, bt, wp, bp, wq, bq,
        thinking_steps=THINKING_STEPS)

    # Kernel and reference share the bf16-operand / f32-accumulate policy, so
    # residual differences are f32 accumulation-order only (~1e-5).
    np.testing.assert_allclose(out["consolidated_tokens"], ref_cons,
                               rtol=5e-4, atol=5e-4)
    np.testing.assert_allclose(out["thinking_tokens"], ref_think,
                               rtol=5e-4, atol=5e-4)
    np.testing.assert_allclose(out["prediction_tokens"], ref_pred,
                               rtol=5e-4, atol=5e-4)
    np.testing.assert_allclose(out["planning_tokens"], ref_plan,
                               rtol=5e-4, atol=5e-4)

    print("KERNEL_OK")
</pallas_src>

<mosaic_0001>
module attributes {stable_mosaic.version = 11 : i64} {
  func.func @hymba_kernel(%arg0: i32, %arg1: memref<16x128xf32, #tpu.memory_space<vmem>>, %arg2: memref<16x128xf32, #tpu.memory_space<vmem>>, %arg3: memref<16x128xf32, #tpu.memory_space<vmem>>, %arg4: memref<16x128xf32, #tpu.memory_space<vmem>>, %arg5: memref<4x128x128xbf16, #tpu.memory_space<vmem>>, %arg6: memref<4x1x128xf32, #tpu.memory_space<vmem>>, %arg7: memref<4x128x128xbf16, #tpu.memory_space<vmem>>, %arg8: memref<4x1x128xf32, #tpu.memory_space<vmem>>, %arg9: memref<128x256xbf16, #tpu.memory_space<vmem>>, %arg10: memref<1x256xf32, #tpu.memory_space<vmem>>, %arg11: memref<16x128xf32, #tpu.memory_space<vmem>>, %arg12: memref<16x128xf32, #tpu.memory_space<vmem>>, %arg13: memref<16x128xf32, #tpu.memory_space<vmem>>, %arg14: memref<16x128xf32, #tpu.memory_space<vmem>>) attributes {dimension_semantics = [#tpu.dimension_semantics<parallel>], iteration_bounds = array<i64: 1>, scalar_prefetch = 0 : i64, scratch_operands = 0 : i64, tpu.core_type = #tpu.core_type<tc>, window_params = [{transform_indices = @transform_0, window_bounds = array<i64: 16, 128>}, {transform_indices = @transform_1, window_bounds = array<i64: 16, 128>}, {transform_indices = @transform_2, window_bounds = array<i64: 16, 128>}, {transform_indices = @transform_3, window_bounds = array<i64: 16, 128>}, {pipeline_mode = #tpu.pipeline_mode<synchronous>, transform_indices = @transform_4, window_bounds = array<i64: 4, 128, 128>}, {pipeline_mode = #tpu.pipeline_mode<synchronous>, transform_indices = @transform_5, window_bounds = array<i64: 4, 1, 128>}, {pipeline_mode = #tpu.pipeline_mode<synchronous>, transform_indices = @transform_6, window_bounds = array<i64: 4, 128, 128>}, {pipeline_mode = #tpu.pipeline_mode<synchronous>, transform_indices = @transform_7, window_bounds = array<i64: 4, 1, 128>}, {pipeline_mode = #tpu.pipeline_mode<synchronous>, transform_indices = @transform_8, window_bounds = array<i64: 128, 256>}, {pipeline_mode = #tpu.pipeline_mode<synchronous>, transform_indices = @transform_9, window_bounds = array<i64: 1, 256>}, {transform_indices = @transform_10, window_bounds = array<i64: 16, 128>}, {transform_indices = @transform_11, window_bounds = array<i64: 16, 128>}, {transform_indices = @transform_12, window_bounds = array<i64: 16, 128>}, {transform_indices = @transform_13, window_bounds = array<i64: 16, 128>}]} {
    %c0 = arith.constant 0 : index
    %c0_0 = arith.constant 0 : index
    %0 = vector.load %arg1[%c0, %c0_0] : memref<16x128xf32, #tpu.memory_space<vmem>>, vector<16x128xf32>
    %c0_1 = arith.constant 0 : index
    %c0_2 = arith.constant 0 : index
    %1 = vector.load %arg3[%c0_1, %c0_2] : memref<16x128xf32, #tpu.memory_space<vmem>>, vector<16x128xf32>
    %2 = arith.addf %0, %1 : vector<16x128xf32>
    %3 = arith.truncf %2 : vector<16x128xf32> to vector<16x128xbf16>
    %c0_3 = arith.constant 0 : index
    %c0_4 = arith.constant 0 : index
    %c0_5 = arith.constant 0 : index
    %4 = vector.load %arg5[%c0_3, %c0_4, %c0_5] : memref<4x128x128xbf16, #tpu.memory_space<vmem>>, vector<1x128x128xbf16>
    %5 = vector.shape_cast %4 : vector<1x128x128xbf16> to vector<128x128xbf16>
    %cst = arith.constant dense<0.000000e+00> : vector<16x128xf32>
    %6 = tpu.matmul %3, %5, %cst {dimension_numbers = #tpu.dot_dimension_numbers<[1], [0], [0], [1], [0, 0, 1, 1], [], []>} : vector<16x128xbf16>, vector<128x128xbf16>, vector<16x128xf32> -> vector<16x128xf32>
    %c0_6 = arith.constant 0 : index
    %c0_7 = arith.constant 0 : index
    %c0_8 = arith.constant 0 : index
    %7 = vector.load %arg6[%c0_6, %c0_7, %c0_8] : memref<4x1x128xf32, #tpu.memory_space<vmem>>, vector<1x1x128xf32>
    %8 = vector.shape_cast %7 : vector<1x1x128xf32> to vector<1x128xf32>
    %9 = vector.broadcast %8 : vector<1x128xf32> to vector<16x128xf32>
    %10 = arith.addf %6, %9 : vector<16x128xf32>
    %cst_9 = arith.constant 0.000000e+00 : f32
    %11 = vector.broadcast %cst_9 : f32 to vector<16x128xf32>
    %12 = arith.maximumf %10, %11 : vector<16x128xf32>
    %13 = arith.truncf %12 : vector<16x128xf32> to vector<16x128xbf16>
    %c1 = arith.constant 1 : index
    %c0_10 = arith.constant 0 : index
    %c0_11 = arith.constant 0 : index
    %14 = vector.load %arg5[%c1, %c0_10, %c0_11] : memref<4x128x128xbf16, #tpu.memory_space<vmem>>, vector<1x128x128xbf16>
    %15 = vector.shape_cast %14 : vector<1x128x128xbf16> to vector<128x128xbf16>
    %cst_12 = arith.constant dense<0.000000e+00> : vector<16x128xf32>
    %16 = tpu.matmul %13, %15, %cst_12 {dimension_numbers = #tpu.dot_dimension_numbers<[1], [0], [0], [1], [0, 0, 1, 1], [], []>} : vector<16x128xbf16>, vector<128x128xbf16>, vector<16x128xf32> -> vector<16x128xf32>
    %c1_13 = arith.constant 1 : index
    %c0_14 = arith.constant 0 : index
    %c0_15 = arith.constant 0 : index
    %17 = vector.load %arg6[%c1_13, %c0_14, %c0_15] : memref<4x1x128xf32, #tpu.memory_space<vmem>>, vector<1x1x128xf32>
    %18 = vector.shape_cast %17 : vector<1x1x128xf32> to vector<1x128xf32>
    %19 = vector.broadcast %18 : vector<1x128xf32> to vector<16x128xf32>
    %20 = arith.addf %16, %19 : vector<16x128xf32>
    %cst_16 = arith.constant 0.000000e+00 : f32
    %21 = vector.broadcast %cst_16 : f32 to vector<16x128xf32>
    %22 = arith.maximumf %20, %21 : vector<16x128xf32>
    %23 = arith.truncf %22 : vector<16x128xf32> to vector<16x128xbf16>
    %c2 = arith.constant 2 : index
    %c0_17 = arith.constant 0 : index
    %c0_18 = arith.constant 0 : index
    %24 = vector.load %arg5[%c2, %c0_17, %c0_18] : memref<4x128x128xbf16, #tpu.memory_space<vmem>>, vector<1x128x128xbf16>
    %25 = vector.shape_cast %24 : vector<1x128x128xbf16> to vector<128x128xbf16>
    %cst_19 = arith.constant dense<0.000000e+00> : vector<16x128xf32>
    %26 = tpu.matmul %23, %25, %cst_19 {dimension_numbers = #tpu.dot_dimension_numbers<[1], [0], [0], [1], [0, 0, 1, 1], [], []>} : vector<16x128xbf16>, vector<128x128xbf16>, vector<16x128xf32> -> vector<16x128xf32>
    %c2_20 = arith.constant 2 : index
    %c0_21 = arith.constant 0 : index
    %c0_22 = arith.constant 0 : index
    %27 = vector.load %arg6[%c2_20, %c0_21, %c0_22] : memref<4x1x128xf32, #tpu.memory_space<vmem>>, vector<1x1x128xf32>
    %28 = vector.shape_cast %27 : vector<1x1x128xf32> to vector<1x128xf32>
    %29 = vector.broadcast %28 : vector<1x128xf32> to vector<16x128xf32>
    %30 = arith.addf %26, %29 : vector<16x128xf32>
    %cst_23 = arith.constant 0.000000e+00 : f32
    %31 = vector.broadcast %cst_23 : f32 to vector<16x128xf32>
    %32 = arith.maximumf %30, %31 : vector<16x128xf32>
    %33 = arith.truncf %32 : vector<16x128xf32> to vector<16x128xbf16>
    %c3 = arith.constant 3 : index
    %c0_24 = arith.constant 0 : index
    %c0_25 = arith.constant 0 : index
    %34 = vector.load %arg5[%c3, %c0_24, %c0_25] : memref<4x128x128xbf16, #tpu.memory_space<vmem>>, vector<1x128x128xbf16>
    %35 = vector.shape_cast %34 : vector<1x128x128xbf16> to vector<128x128xbf16>
    %cst_26 = arith.constant dense<0.000000e+00> : vector<16x128xf32>
    %36 = tpu.matmul %33, %35, %cst_26 {dimension_numbers = #tpu.dot_dimension_numbers<[1], [0], [0], [1], [0, 0, 1, 1], [], []>} : vector<16x128xbf16>, vector<128x128xbf16>, vector<16x128xf32> -> vector<16x128xf32>
    %c3_27 = arith.constant 3 : index
    %c0_28 = arith.constant 0 : index
    %c0_29 = arith.constant 0 : index
    %37 = vector.load %arg6[%c3_27, %c0_28, %c0_29] : memref<4x1x128xf32, #tpu.memory_space<vmem>>, vector<1x1x128xf32>
    %38 = vector.shape_cast %37 : vector<1x1x128xf32> to vector<1x128xf32>
    %39 = vector.broadcast %38 : vector<1x128xf32> to vector<16x128xf32>
    %40 = arith.addf %36, %39 : vector<16x128xf32>
    %cst_30 = arith.constant 0.000000e+00 : f32
    %41 = vector.broadcast %cst_30 : f32 to vector<16x128xf32>
    %42 = arith.maximumf %40, %41 : vector<16x128xf32>
    %c0_31 = arith.constant 0 : index
    %c0_32 = arith.constant 0 : index
    %43 = vector.load %arg2[%c0_31, %c0_32] : memref<16x128xf32, #tpu.memory_space<vmem>>, vector<16x128xf32>
    %44 = math.tanh %43 : vector<16x128xf32>
    %cst_33 = arith.constant 1.000000e+00 : f32
    %45 = vector.broadcast %cst_33 : f32 to vector<16x128xf32>
    %46 = arith.addf %45, %44 : vector<16x128xf32>
    %47 = arith.mulf %42, %46 : vector<16x128xf32>
    %c0_34 = arith.constant 0 : index
    %c0_35 = arith.constant 0 : index
    %48 = vector.load %arg11[%c0_34, %c0_35] : memref<16x128xf32, #tpu.memory_space<vmem>>, vector<16x128xf32>
    tpu.vector_store %arg11[%c0_34, %c0_35], %47 {strides = array<i32>} : memref<16x128xf32, #tpu.memory_space<vmem>>, vector<16x128xf32>,
    %c0_36 = arith.constant 0 : index
    %c0_37 = arith.constant 0 : index
    %49 = vector.load %arg4[%c0_36, %c0_37] : memref<16x128xf32, #tpu.memory_space<vmem>>, vector<16x128xf32>
    %50 = arith.mulf %47, %49 : vector<16x128xf32>
    %51 = arith.truncf %50 : vector<16x128xf32> to vector<16x128xbf16>
    %c0_38 = arith.constant 0 : index
    %c0_39 = arith.constant 0 : index
    %c0_40 = arith.constant 0 : index
    %52 = vector.load %arg7[%c0_38, %c0_39, %c0_40] : memref<4x128x128xbf16, #tpu.memory_space<vmem>>, vector<1x128x128xbf16>
    %53 = vector.shape_cast %52 : vector<1x128x128xbf16> to vector<128x128xbf16>
    %cst_41 = arith.constant dense<0.000000e+00> : vector<16x128xf32>
    %54 = tpu.matmul %51, %53, %cst_41 {dimension_numbers = #tpu.dot_dimension_numbers<[1], [0], [0], [1], [0, 0, 1, 1], [], []>} : vector<16x128xbf16>, vector<128x128xbf16>, vector<16x128xf32> -> vector<16x128xf32>
    %c0_42 = arith.constant 0 : index
    %c0_43 = arith.constant 0 : index
    %c0_44 = arith.constant 0 : index
    %55 = vector.load %arg8[%c0_42, %c0_43, %c0_44] : memref<4x1x128xf32, #tpu.memory_space<vmem>>, vector<1x1x128xf32>
    %56 = vector.shape_cast %55 : vector<1x1x128xf32> to vector<1x128xf32>
    %57 = vector.broadcast %56 : vector<1x128xf32> to vector<16x128xf32>
    %58 = arith.addf %54, %57 : vector<16x128xf32>
    %59 = math.tanh %58 : vector<16x128xf32>
    %60 = arith.mulf %59, %49 : vector<16x128xf32>
    %61 = arith.truncf %60 : vector<16x128xf32> to vector<16x128xbf16>
    %c1_45 = arith.constant 1 : index
    %c0_46 = arith.constant 0 : index
    %c0_47 = arith.constant 0 : index
    %62 = vector.load %arg7[%c1_45, %c0_46, %c0_47] : memref<4x128x128xbf16, #tpu.memory_space<vmem>>, vector<1x128x128xbf16>
    %63 = vector.shape_cast %62 : vector<1x128x128xbf16> to vector<128x128xbf16>
    %cst_48 = arith.constant dense<0.000000e+00> : vector<16x128xf32>
    %64 = tpu.matmul %61, %63, %cst_48 {dimension_numbers = #tpu.dot_dimension_numbers<[1], [0], [0], [1], [0, 0, 1, 1], [], []>} : vector<16x128xbf16>, vector<128x128xbf16>, vector<16x128xf32> -> vector<16x128xf32>
    %c1_49 = arith.constant 1 : index
    %c0_50 = arith.constant 0 : index
    %c0_51 = arith.constant 0 : index
    %65 = vector.load %arg8[%c1_49, %c0_50, %c0_51] : memref<4x1x128xf32, #tpu.memory_space<vmem>>, vector<1x1x128xf32>
    %66 = vector.shape_cast %65 : vector<1x1x128xf32> to vector<1x128xf32>
    %67 = vector.broadcast %66 : vector<1x128xf32> to vector<16x128xf32>
    %68 = arith.addf %64, %67 : vector<16x128xf32>
    %69 = math.tanh %68 : vector<16x128xf32>
    %70 = arith.mulf %69, %49 : vector<16x128xf32>
    %71 = arith.truncf %70 : vector<16x128xf32> to vector<16x128xbf16>
    %c2_52 = arith.constant 2 : index
    %c0_53 = arith.constant 0 : index
    %c0_54 = arith.constant 0 : index
    %72 = vector.load %arg7[%c2_52, %c0_53, %c0_54] : memref<4x128x128xbf16, #tpu.memory_space<vmem>>, vector<1x128x128xbf16>
    %73 = vector.shape_cast %72 : vector<1x128x128xbf16> to vector<128x128xbf16>
    %cst_55 = arith.constant dense<0.000000e+00> : vector<16x128xf32>
    %74 = tpu.matmul %71, %73, %cst_55 {dimension_numbers = #tpu.dot_dimension_numbers<[1], [0], [0], [1], [0, 0, 1, 1], [], []>} : vector<16x128xbf16>, vector<128x128xbf16>, vector<16x128xf32> -> vector<16x128xf32>
    %c2_56 = arith.constant 2 : index
    %c0_57 = arith.constant 0 : index
    %c0_58 = arith.constant 0 : index
    %75 = vector.load %arg8[%c2_56, %c0_57, %c0_58] : memref<4x1x128xf32, #tpu.memory_space<vmem>>, vector<1x1x128xf32>
    %76 = vector.shape_cast %75 : vector<1x1x128xf32> to vector<1x128xf32>
    %77 = vector.broadcast %76 : vector<1x128xf32> to vector<16x128xf32>
    %78 = arith.addf %74, %77 : vector<16x128xf32>
    %79 = math.tanh %78 : vector<16x128xf32>
    %80 = arith.mulf %79, %49 : vector<16x128xf32>
    %81 = arith.truncf %80 : vector<16x128xf32> to vector<16x128xbf16>
    %c3_59 = arith.constant 3 : index
    %c0_60 = arith.constant 0 : index
    %c0_61 = arith.constant 0 : index
    %82 = vector.load %arg7[%c3_59, %c0_60, %c0_61] : memref<4x128x128xbf16, #tpu.memory_space<vmem>>, vector<1x128x128xbf16>
    %83 = vector.shape_cast %82 : vector<1x128x128xbf16> to vector<128x128xbf16>
    %cst_62 = arith.constant dense<0.000000e+00> : vector<16x128xf32>
    %84 = tpu.matmul %81, %83, %cst_62 {dimension_numbers = #tpu.dot_dimension_numbers<[1], [0], [0], [1], [0, 0, 1, 1], [], []>} : vector<16x128xbf16>, vector<128x128xbf16>, vector<16x128xf32> -> vector<16x128xf32>
    %c3_63 = arith.constant 3 : index
    %c0_64 = arith.constant 0 : index
    %c0_65 = arith.constant 0 : index
    %85 = vector.load %arg8[%c3_63, %c0_64, %c0_65] : memref<4x1x128xf32, #tpu.memory_space<vmem>>, vector<1x1x128xf32>
    %86 = vector.shape_cast %85 : vector<1x1x128xf32> to vector<1x128xf32>
    %87 = vector.broadcast %86 : vector<1x128xf32> to vector<16x128xf32>
    %88 = arith.addf %84, %87 : vector<16x128xf32>
    %89 = math.tanh %88 : vector<16x128xf32>
    %90 = arith.mulf %89, %49 : vector<16x128xf32>
    %91 = arith.truncf %90 : vector<16x128xf32> to vector<16x128xbf16>
    %c0_66 = arith.constant 0 : index
    %c0_67 = arith.constant 0 : index
    %c0_68 = arith.constant 0 : index
    %92 = vector.load %arg7[%c0_66, %c0_67, %c0_68] : memref<4x128x128xbf16, #tpu.memory_space<vmem>>, vector<1x128x128xbf16>
    %93 = vector.shape_cast %92 : vector<1x128x128xbf16> to vector<128x128xbf16>
    %cst_69 = arith.constant dense<0.000000e+00> : vector<16x128xf32>
    %94 = tpu.matmul %91, %93, %cst_69 {dimension_numbers = #tpu.dot_dimension_numbers<[1], [0], [0], [1], [0, 0, 1, 1], [], []>} : vector<16x128xbf16>, vector<128x128xbf16>, vector<16x128xf32> -> vector<16x128xf32>
    %c0_70 = arith.constant 0 : index
    %c0_71 = arith.constant 0 : index
    %c0_72 = arith.constant 0 : index
    %95 = vector.load %arg8[%c0_70, %c0_71, %c0_72] : memref<4x1x128xf32, #tpu.memory_space<vmem>>, vector<1x1x128xf32>
    %96 = vector.shape_cast %95 : vector<1x1x128xf32> to vector<1x128xf32>
    %97 = vector.broadcast %96 : vector<1x128xf32> to vector<16x128xf32>
    %98 = arith.addf %94, %97 : vector<16x128xf32>
    %99 = math.tanh %98 : vector<16x128xf32>
    %100 = arith.mulf %99, %49 : vector<16x128xf32>
    %101 = arith.truncf %100 : vector<16x128xf32> to vector<16x128xbf16>
    %c1_73 = arith.constant 1 : index
    %c0_74 = arith.constant 0 : index
    %c0_75 = arith.constant 0 : index
    %102 = vector.load %arg7[%c1_73, %c0_74, %c0_75] : memref<4x128x128xbf16, #tpu.memory_space<vmem>>, vector<1x128x128xbf16>
    %103 = vector.shape_cast %102 : vector<1x128x128xbf16> to vector<128x128xbf16>
    %cst_76 = arith.constant dense<0.000000e+00> : vector<16x128xf32>
    %104 = tpu.matmul %101, %103, %cst_76 {dimension_numbers = #tpu.dot_dimension_numbers<[1], [0], [0], [1], [0, 0, 1, 1], [], []>} : vector<16x128xbf16>, vector<128x128xbf16>, vector<16x128xf32> -> vector<16x128xf32>
    %c1_77 = arith.constant 1 : index
    %c0_78 = arith.constant 0 : index
    %c0_79 = arith.constant 0 : index
    %105 = vector.load %arg8[%c1_77, %c0_78, %c0_79] : memref<4x1x128xf32, #tpu.memory_space<vmem>>, vector<1x1x128xf32>
    %106 = vector.shape_cast %105 : vector<1x1x128xf32> to vector<1x128xf32>
    %107 = vector.broadcast %106 : vector<1x128xf32> to vector<16x128xf32>
    %108 = arith.addf %104, %107 : vector<16x128xf32>
    %109 = math.tanh %108 : vector<16x128xf32>
    %110 = arith.mulf %109, %49 : vector<16x128xf32>
    %111 = arith.truncf %110 : vector<16x128xf32> to vector<16x128xbf16>
    %c2_80 = arith.constant 2 : index
    %c0_81 = arith.constant 0 : index
    %c0_82 = arith.constant 0 : index
    %112 = vector.load %arg7[%c2_80, %c0_81, %c0_82] : memref<4x128x128xbf16, #tpu.memory_space<vmem>>, vector<1x128x128xbf16>
    %113 = vector.shape_cast %112 : vector<1x128x128xbf16> to vector<128x128xbf16>
    %cst_83 = arith.constant dense<0.000000e+00> : vector<16x128xf32>
    %114 = tpu.matmul %111, %113, %cst_83 {dimension_numbers = #tpu.dot_dimension_numbers<[1], [0], [0], [1], [0, 0, 1, 1], [], []>} : vector<16x128xbf16>, vector<128x128xbf16>, vector<16x128xf32> -> vector<16x128xf32>
    %c2_84 = arith.constant 2 : index
    %c0_85 = arith.constant 0 : index
    %c0_86 = arith.constant 0 : index
    %115 = vector.load %arg8[%c2_84, %c0_85, %c0_86] : memref<4x1x128xf32, #tpu.memory_space<vmem>>, vector<1x1x128xf32>
    %116 = vector.shape_cast %115 : vector<1x1x128xf32> to vector<1x128xf32>
    %117 = vector.broadcast %116 : vector<1x128xf32> to vector<16x128xf32>
    %118 = arith.addf %114, %117 : vector<16x128xf32>
    %119 = math.tanh %118 : vector<16x128xf32>
    %120 = arith.mulf %119, %49 : vector<16x128xf32>
    %121 = arith.truncf %120 : vector<16x128xf32> to vector<16x128xbf16>
    %c3_87 = arith.constant 3 : index
    %c0_88 = arith.constant 0 : index
    %c0_89 = arith.constant 0 : index
    %122 = vector.load %arg7[%c3_87, %c0_88, %c0_89] : memref<4x128x128xbf16, #tpu.memory_space<vmem>>, vector<1x128x128xbf16>
    %123 = vector.shape_cast %122 : vector<1x128x128xbf16> to vector<128x128xbf16>
    %cst_90 = arith.constant dense<0.000000e+00> : vector<16x128xf32>
    %124 = tpu.matmul %121, %123, %cst_90 {dimension_numbers = #tpu.dot_dimension_numbers<[1], [0], [0], [1], [0, 0, 1, 1], [], []>} : vector<16x128xbf16>, vector<128x128xbf16>, vector<16x128xf32> -> vector<16x128xf32>
    %c3_91 = arith.constant 3 : index
    %c0_92 = arith.constant 0 : index
    %c0_93 = arith.constant 0 : index
    %125 = vector.load %arg8[%c3_91, %c0_92, %c0_93] : memref<4x1x128xf32, #tpu.memory_space<vmem>>, vector<1x1x128xf32>
    %126 = vector.shape_cast %125 : vector<1x1x128xf32> to vector<1x128xf32>
    %127 = vector.broadcast %126 : vector<1x128xf32> to vector<16x128xf32>
    %128 = arith.addf %124, %127 : vector<16x128xf32>
    %129 = math.tanh %128 : vector<16x128xf32>
    %130 = arith.mulf %129, %49 : vector<16x128xf32>
    %131 = arith.truncf %130 : vector<16x128xf32> to vector<16x128xbf16>
    %c0_94 = arith.constant 0 : index
    %c0_95 = arith.constant 0 : index
    %c0_96 = arith.constant 0 : index
    %132 = vector.load %arg7[%c0_94, %c0_95, %c0_96] : memref<4x128x128xbf16, #tpu.memory_space<vmem>>, vector<1x128x128xbf16>
    %133 = vector.shape_cast %132 : vector<1x128x128xbf16> to vector<128x128xbf16>
    %cst_97 = arith.constant dense<0.000000e+00> : vector<16x128xf32>
    %134 = tpu.matmul %131, %133, %cst_97 {dimension_numbers = #tpu.dot_dimension_numbers<[1], [0], [0], [1], [0, 0, 1, 1], [], []>} : vector<16x128xbf16>, vector<128x128xbf16>, vector<16x128xf32> -> vector<16x128xf32>
    %c0_98 = arith.constant 0 : index
    %c0_99 = arith.constant 0 : index
    %c0_100 = arith.constant 0 : index
    %135 = vector.load %arg8[%c0_98, %c0_99, %c0_100] : memref<4x1x128xf32, #tpu.memory_space<vmem>>, vector<1x1x128xf32>
    %136 = vector.shape_cast %135 : vector<1x1x128xf32> to vector<1x128xf32>
    %137 = vector.broadcast %136 : vector<1x128xf32> to vector<16x128xf32>
    %138 = arith.addf %134, %137 : vector<16x128xf32>
    %139 = math.tanh %138 : vector<16x128xf32>
    %140 = arith.mulf %139, %49 : vector<16x128xf32>
    %141 = arith.truncf %140 : vector<16x128xf32> to vector<16x128xbf16>
    %c1_101 = arith.constant 1 : index
    %c0_102 = arith.constant 0 : index
    %c0_103 = arith.constant 0 : index
    %142 = vector.load %arg7[%c1_101, %c0_102, %c0_103] : memref<4x128x128xbf16, #tpu.memory_space<vmem>>, vector<1x128x128xbf16>
    %143 = vector.shape_cast %142 : vector<1x128x128xbf16> to vector<128x128xbf16>
    %cst_104 = arith.constant dense<0.000000e+00> : vector<16x128xf32>
    %144 = tpu.matmul %141, %143, %cst_104 {dimension_numbers = #tpu.dot_dimension_numbers<[1], [0], [0], [1], [0, 0, 1, 1], [], []>} : vector<16x128xbf16>, vector<128x128xbf16>, vector<16x128xf32> -> vector<16x128xf32>
    %c1_105 = arith.constant 1 : index
    %c0_106 = arith.constant 0 : index
    %c0_107 = arith.constant 0 : index
    %145 = vector.load %arg8[%c1_105, %c0_106, %c0_107] : memref<4x1x128xf32, #tpu.memory_space<vmem>>, vector<1x1x128xf32>
    %146 = vector.shape_cast %145 : vector<1x1x128xf32> to vector<1x128xf32>
    %147 = vector.broadcast %146 : vector<1x128xf32> to vector<16x128xf32>
    %148 = arith.addf %144, %147 : vector<16x128xf32>
    %149 = math.tanh %148 : vector<16x128xf32>
    %150 = arith.mulf %149, %49 : vector<16x128xf32>
    %151 = arith.truncf %150 : vector<16x128xf32> to vector<16x128xbf16>
    %c2_108 = arith.constant 2 : index
    %c0_109 = arith.constant 0 : index
    %c0_110 = arith.constant 0 : index
    %152 = vector.load %arg7[%c2_108, %c0_109, %c0_110] : memref<4x128x128xbf16, #tpu.memory_space<vmem>>, vector<1x128x128xbf16>
    %153 = vector.shape_cast %152 : vector<1x128x128xbf16> to vector<128x128xbf16>
    %cst_111 = arith.constant dense<0.000000e+00> : vector<16x128xf32>
    %154 = tpu.matmul %151, %153, %cst_111 {dimension_numbers = #tpu.dot_dimension_numbers<[1], [0], [0], [1], [0, 0, 1, 1], [], []>} : vector<16x128xbf16>, vector<128x128xbf16>, vector<16x128xf32> -> vector<16x128xf32>
    %c2_112 = arith.constant 2 : index
    %c0_113 = arith.constant 0 : index
    %c0_114 = arith.constant 0 : index
    %155 = vector.load %arg8[%c2_112, %c0_113, %c0_114] : memref<4x1x128xf32, #tpu.memory_space<vmem>>, vector<1x1x128xf32>
    %156 = vector.shape_cast %155 : vector<1x1x128xf32> to vector<1x128xf32>
    %157 = vector.broadcast %156 : vector<1x128xf32> to vector<16x128xf32>
    %158 = arith.addf %154, %157 : vector<16x128xf32>
    %159 = math.tanh %158 : vector<16x128xf32>
    %160 = arith.mulf %159, %49 : vector<16x128xf32>
    %161 = arith.truncf %160 : vector<16x128xf32> to vector<16x128xbf16>
    %c3_115 = arith.constant 3 : index
    %c0_116 = arith.constant 0 : index
    %c0_117 = arith.constant 0 : index
    %162 = vector.load %arg7[%c3_115, %c0_116, %c0_117] : memref<4x128x128xbf16, #tpu.memory_space<vmem>>, vector<1x128x128xbf16>
    %163 = vector.shape_cast %162 : vector<1x128x128xbf16> to vector<128x128xbf16>
    %cst_118 = arith.constant dense<0.000000e+00> : vector<16x128xf32>
    %164 = tpu.matmul %161, %163, %cst_118 {dimension_numbers = #tpu.dot_dimension_numbers<[1], [0], [0], [1], [0, 0, 1, 1], [], []>} : vector<16x128xbf16>, vector<128x128xbf16>, vector<16x128xf32> -> vector<16x128xf32>
    %c3_119 = arith.constant 3 : index
    %c0_120 = arith.constant 0 : index
    %c0_121 = arith.constant 0 : index
    %165 = vector.load %arg8[%c3_119, %c0_120, %c0_121] : memref<4x1x128xf32, #tpu.memory_space<vmem>>, vector<1x1x128xf32>
    %166 = vector.shape_cast %165 : vector<1x1x128xf32> to vector<1x128xf32>
    %167 = vector.broadcast %166 : vector<1x128xf32> to vector<16x128xf32>
    %168 = arith.addf %164, %167 : vector<16x128xf32>
    %169 = math.tanh %168 : vector<16x128xf32>
    %170 = arith.mulf %169, %49 : vector<16x128xf32>
    %171 = arith.truncf %170 : vector<16x128xf32> to vector<16x128xbf16>
    %c0_122 = arith.constant 0 : index
    %c0_123 = arith.constant 0 : index
    %c0_124 = arith.constant 0 : index
    %172 = vector.load %arg7[%c0_122, %c0_123, %c0_124] : memref<4x128x128xbf16, #tpu.memory_space<vmem>>, vector<1x128x128xbf16>
    %173 = vector.shape_cast %172 : vector<1x128x128xbf16> to vector<128x128xbf16>
    %cst_125 = arith.constant dense<0.000000e+00> : vector<16x128xf32>
    %174 = tpu.matmul %171, %173, %cst_125 {dimension_numbers = #tpu.dot_dimension_numbers<[1], [0], [0], [1], [0, 0, 1, 1], [], []>} : vector<16x128xbf16>, vector<128x128xbf16>, vector<16x128xf32> -> vector<16x128xf32>
    %c0_126 = arith.constant 0 : index
    %c0_127 = arith.constant 0 : index
    %c0_128 = arith.constant 0 : index
    %175 = vector.load %arg8[%c0_126, %c0_127, %c0_128] : memref<4x1x128xf32, #tpu.memory_space<vmem>>, vector<1x1x128xf32>
    %176 = vector.shape_cast %175 : vector<1x1x128xf32> to vector<1x128xf32>
    %177 = vector.broadcast %176 : vector<1x128xf32> to vector<16x128xf32>
    %178 = arith.addf %174, %177 : vector<16x128xf32>
    %179 = math.tanh %178 : vector<16x128xf32>
    %180 = arith.mulf %179, %49 : vector<16x128xf32>
    %181 = arith.truncf %180 : vector<16x128xf32> to vector<16x128xbf16>
    %c1_129 = arith.constant 1 : index
    %c0_130 = arith.constant 0 : index
    %c0_131 = arith.constant 0 : index
    %182 = vector.load %arg7[%c1_129, %c0_130, %c0_131] : memref<4x128x128xbf16, #tpu.memory_space<vmem>>, vector<1x128x128xbf16>
    %183 = vector.shape_cast %182 : vector<1x128x128xbf16> to vector<128x128xbf16>
    %cst_132 = arith.constant dense<0.000000e+00> : vector<16x128xf32>
    %184 = tpu.matmul %181, %183, %cst_132 {dimension_numbers = #tpu.dot_dimension_numbers<[1], [0], [0], [1], [0, 0, 1, 1], [], []>} : vector<16x128xbf16>, vector<128x128xbf16>, vector<16x128xf32> -> vector<16x128xf32>
    %c1_133 = arith.constant 1 : index
    %c0_134 = arith.constant 0 : index
    %c0_135 = arith.constant 0 : index
    %185 = vector.load %arg8[%c1_133, %c0_134, %c0_135] : memref<4x1x128xf32, #tpu.memory_space<vmem>>, vector<1x1x128xf32>
    %186 = vector.shape_cast %185 : vector<1x1x128xf32> to vector<1x128xf32>
    %187 = vector.broadcast %186 : vector<1x128xf32> to vector<16x128xf32>
    %188 = arith.addf %184, %187 : vector<16x128xf32>
    %189 = math.tanh %188 : vector<16x128xf32>
    %190 = arith.mulf %189, %49 : vector<16x128xf32>
    %191 = arith.truncf %190 : vector<16x128xf32> to vector<16x128xbf16>
    %c2_136 = arith.constant 2 : index
    %c0_137 = arith.constant 0 : index
    %c0_138 = arith.constant 0 : index
    %192 = vector.load %arg7[%c2_136, %c0_137, %c0_138] : memref<4x128x128xbf16, #tpu.memory_space<vmem>>, vector<1x128x128xbf16>
    %193 = vector.shape_cast %192 : vector<1x128x128xbf16> to vector<128x128xbf16>
    %cst_139 = arith.constant dense<0.000000e+00> : vector<16x128xf32>
    %194 = tpu.matmul %191, %193, %cst_139 {dimension_numbers = #tpu.dot_dimension_numbers<[1], [0], [0], [1], [0, 0, 1, 1], [], []>} : vector<16x128xbf16>, vector<128x128xbf16>, vector<16x128xf32> -> vector<16x128xf32>
    %c2_140 = arith.constant 2 : index
    %c0_141 = arith.constant 0 : index
    %c0_142 = arith.constant 0 : index
    %195 = vector.load %arg8[%c2_140, %c0_141, %c0_142] : memref<4x1x128xf32, #tpu.memory_space<vmem>>, vector<1x1x128xf32>
    %196 = vector.shape_cast %195 : vector<1x1x128xf32> to vector<1x128xf32>
    %197 = vector.broadcast %196 : vector<1x128xf32> to vector<16x128xf32>
    %198 = arith.addf %194, %197 : vector<16x128xf32>
    %199 = math.tanh %198 : vector<16x128xf32>
    %200 = arith.mulf %199, %49 : vector<16x128xf32>
    %201 = arith.truncf %200 : vector<16x128xf32> to vector<16x128xbf16>
    %c3_143 = arith.constant 3 : index
    %c0_144 = arith.constant 0 : index
    %c0_145 = arith.constant 0 : index
    %202 = vector.load %arg7[%c3_143, %c0_144, %c0_145] : memref<4x128x128xbf16, #tpu.memory_space<vmem>>, vector<1x128x128xbf16>
    %203 = vector.shape_cast %202 : vector<1x128x128xbf16> to vector<128x128xbf16>
    %cst_146 = arith.constant dense<0.000000e+00> : vector<16x128xf32>
    %204 = tpu.matmul %201, %203, %cst_146 {dimension_numbers = #tpu.dot_dimension_numbers<[1], [0], [0], [1], [0, 0, 1, 1], [], []>} : vector<16x128xbf16>, vector<128x128xbf16>, vector<16x128xf32> -> vector<16x128xf32>
    %c3_147 = arith.constant 3 : index
    %c0_148 = arith.constant 0 : index
    %c0_149 = arith.constant 0 : index
    %205 = vector.load %arg8[%c3_147, %c0_148, %c0_149] : memref<4x1x128xf32, #tpu.memory_space<vmem>>, vector<1x1x128xf32>
    %206 = vector.shape_cast %205 : vector<1x1x128xf32> to vector<1x128xf32>
    %207 = vector.broadcast %206 : vector<1x128xf32> to vector<16x128xf32>
    %208 = arith.addf %204, %207 : vector<16x128xf32>
    %209 = math.tanh %208 : vector<16x128xf32>
    %c0_150 = arith.constant 0 : index
    %c0_151 = arith.constant 0 : index
    %210 = vector.load %arg12[%c0_150, %c0_151] : memref<16x128xf32, #tpu.memory_space<vmem>>, vector<16x128xf32>
    tpu.vector_store %arg12[%c0_150, %c0_151], %209 {strides = array<i32>} : memref<16x128xf32, #tpu.memory_space<vmem>>, vector<16x128xf32>,
    %211 = arith.truncf %209 : vector<16x128xf32> to vector<16x128xbf16>
    %c0_152 = arith.constant 0 : index
    %c0_153 = arith.constant 0 : index
    %212 = vector.load %arg9[%c0_152, %c0_153] : memref<128x256xbf16, #tpu.memory_space<vmem>>, vector<128x256xbf16>
    %cst_154 = arith.constant dense<0.000000e+00> : vector<16x256xf32>
    %213 = tpu.matmul %211, %212, %cst_154 {dimension_numbers = #tpu.dot_dimension_numbers<[1], [0], [0], [1], [0, 0, 1, 1], [], []>} : vector<16x128xbf16>, vector<128x256xbf16>, vector<16x256xf32> -> vector<16x256xf32>
    %c0_155 = arith.constant 0 : index
    %c0_156 = arith.constant 0 : index
    %214 = vector.load %arg10[%c0_155, %c0_156] : memref<1x256xf32, #tpu.memory_space<vmem>>, vector<1x256xf32>
    %215 = vector.broadcast %214 : vector<1x256xf32> to vector<16x256xf32>
    %216 = arith.addf %213, %215 : vector<16x256xf32>
    %217 = vector.extract_strided_slice %216 {offsets = [0, 0], sizes = [16, 128], strides = [1, 1]} : vector<16x256xf32> to vector<16x128xf32>
    %c0_157 = arith.constant 0 : index
    %c0_158 = arith.constant 0 : index
    %218 = vector.load %arg13[%c0_157, %c0_158] : memref<16x128xf32, #tpu.memory_space<vmem>>, vector<16x128xf32>
    tpu.vector_store %arg13[%c0_157, %c0_158], %217 {strides = array<i32>} : memref<16x128xf32, #tpu.memory_space<vmem>>, vector<16x128xf32>,
    %219 = vector.extract_strided_slice %216 {offsets = [0, 128], sizes = [16, 128], strides = [1, 1]} : vector<16x256xf32> to vector<16x128xf32>
    %c0_159 = arith.constant 0 : index
    %c0_160 = arith.constant 0 : index
    %220 = vector.load %arg14[%c0_159, %c0_160] : memref<16x128xf32, #tpu.memory_space<vmem>>, vector<16x128xf32>
    tpu.vector_store %arg14[%c0_159, %c0_160], %219 {strides = array<i32>} : memref<16x128xf32, #tpu.memory_space<vmem>>, vector<16x128xf32>,
    return
  }
  func.func @transform_0(%arg0: i32) -> (i32, i32) {
    %c0_i32 = arith.constant 0 : i32
    %c0_i32_0 = arith.constant 0 : i32
    return %arg0, %c0_i32 : i32, i32
  }
  func.func @transform_1(%arg0: i32) -> (i32, i32) {
    %c0_i32 = arith.constant 0 : i32
    %c0_i32_0 = arith.constant 0 : i32
    return %arg0, %c0_i32 : i32, i32
  }
  func.func @transform_2(%arg0: i32) -> (i32, i32) {
    %c0_i32 = arith.constant 0 : i32
    %c0_i32_0 = arith.constant 0 : i32
    return %arg0, %c0_i32 : i32, i32
  }
  func.func @transform_3(%arg0: i32) -> (i32, i32) {
    %c0_i32 = arith.constant 0 : i32
    %c0_i32_0 = arith.constant 0 : i32
    return %arg0, %c0_i32 : i32, i32
  }
  func.func @transform_4(%arg0: i32) -> (i32, i32, i32) {
    %c0_i32 = arith.constant 0 : i32
    %c0_i32_0 = arith.constant 0 : i32
    %c0_i32_1 = arith.constant 0 : i32
    %c0_i32_2 = arith.constant 0 : i32
    return %c0_i32, %c0_i32_0, %c0_i32_1 : i32, i32, i32
  }
  func.func @transform_5(%arg0: i32) -> (i32, i32, i32) {
    %c0_i32 = arith.constant 0 : i32
    %c0_i32_0 = arith.constant 0 : i32
    %c0_i32_1 = arith.constant 0 : i32
    %c0_i32_2 = arith.constant 0 : i32
    return %c0_i32, %c0_i32_0, %c0_i32_1 : i32, i32, i32
  }
  func.func @transform_6(%arg0: i32) -> (i32, i32, i32) {
    %c0_i32 = arith.constant 0 : i32
    %c0_i32_0 = arith.constant 0 : i32
    %c0_i32_1 = arith.constant 0 : i32
    %c0_i32_2 = arith.constant 0 : i32
    return %c0_i32, %c0_i32_0, %c0_i32_1 : i32, i32, i32
  }
  func.func @transform_7(%arg0: i32) -> (i32, i32, i32) {
    %c0_i32 = arith.constant 0 : i32
    %c0_i32_0 = arith.constant 0 : i32
    %c0_i32_1 = arith.constant 0 : i32
    %c0_i32_2 = arith.constant 0 : i32
    return %c0_i32, %c0_i32_0, %c0_i32_1 : i32, i32, i32
  }
  func.func @transform_8(%arg0: i32) -> (i32, i32) {
    %c0_i32 = arith.constant 0 : i32
    %c0_i32_0 = arith.constant 0 : i32
    %c0_i32_1 = arith.constant 0 : i32
    return %c0_i32, %c0_i32_0 : i32, i32
  }
  func.func @transform_9(%arg0: i32) -> (i32, i32) {
    %c0_i32 = arith.constant 0 : i32
    %c0_i32_0 = arith.constant 0 : i32
    %c0_i32_1 = arith.constant 0 : i32
    return %c0_i32, %c0_i32_0 : i32, i32
  }
  func.func @transform_10(%arg0: i32) -> (i32, i32) {
    %c0_i32 = arith.constant 0 : i32
    %c0_i32_0 = arith.constant 0 : i32
    return %arg0, %c0_i32 : i32, i32
  }
  func.func @transform_11(%arg0: i32) -> (i32, i32) {
    %c0_i32 = arith.constant 0 : i32
    %c0_i32_0 = arith.constant 0 : i32
    return %arg0, %c0_i32 : i32, i32
  }
  func.func @transform_12(%arg0: i32) -> (i32, i32) {
    %c0_i32 = arith.constant 0 : i32
    %c0_i32_0 = arith.constant 0 : i32
    return %arg0, %c0_i32 : i32, i32
  }
  func.func @transform_13(%arg0: i32) -> (i32, i32) {
    %c0_i32 = arith.constant 0 : i32
    %c0_i32_0 = arith.constant 0 : i32
    return %arg0, %c0_i32 : i32, i32
  }
}

</mosaic_0001>

<llo_original>
// kernel: tpu_custom_call.1
$region0: #{tpu_custom_call.1}
  #allocation0 [shape = 'u32[]', space=smem, size = 0x4, offset = 0x4, fixed_abs, tag = 'smem constant byte address 0x4 - core index']
  #allocation1 [shape = 'u32[144,128]{1,0:T(1,128)}', space=vmem, size = 0x12000, scoped, tag = 'internal scratch']
  %s0 = inlined_call_operand.hbm [shape: f32[16,128], index: 0, kind: input, shape index: {}]
  %s1 = inlined_call_operand.hbm [shape: f32[16,128], index: 1, kind: input, shape index: {}]
  %s2 = inlined_call_operand.hbm [shape: f32[16,128], index: 2, kind: input, shape index: {}]
  %s3 = inlined_call_operand.hbm [shape: f32[16,128], index: 3, kind: input, shape index: {}]
  %s4 = inlined_call_operand.hbm [shape: bf16[4,128,128], index: 4, kind: input, shape index: {}]
  %s5 = inlined_call_operand.vmem [shape: f32[4,1,128], index: 5, kind: input, shape index: {}]
  %s6 = inlined_call_operand.hbm [shape: bf16[4,128,128], index: 6, kind: input, shape index: {}]
  %s7 = inlined_call_operand.vmem [shape: f32[4,1,128], index: 7, kind: input, shape index: {}]
  %s8 = inlined_call_operand.hbm [shape: bf16[128,256], index: 8, kind: input, shape index: {}]
  %s9 = inlined_call_operand.vmem [shape: f32[1,256], index: 9, kind: input, shape index: {}]
  %s10 = inlined_call_operand.hbm [shape: f32[16,128], index: 10, kind: output, shape index: {0}]
  %s11 = inlined_call_operand.hbm [shape: f32[16,128], index: 11, kind: output, shape index: {1}]
  %s12 = inlined_call_operand.hbm [shape: f32[16,128], index: 12, kind: output, shape index: {2}]
  %s13 = inlined_call_operand.hbm [shape: f32[16,128], index: 13, kind: output, shape index: {3}]
  %14 = xla_tuple %s10, %s11, %s12, %s13
  %s15 = sld [smem:[#allocation0]]
  $region102: #{tpu_custom_call.1} parent=0
    _
  %s17 = ssub.s32 1, %s15
  %s18 = scalar_select 0, %s17, %s15
  $region1: #{tpu_custom_call.1} parent=0
    #allocation2 [shape = 'u8[8192]{0}', space=vmem, size = 0x2000, scoped, tag = 'input window, operand 0, single buffered']
    #allocation3 [shape = 's32[1]{0}', space=sflag, size = 0x4, scoped, tag = 'scoped memory for tpu_custom_call.1']
    #allocation4 [shape = 's32[1]{0}', space=sflag, size = 0x4, scoped, tag = 'scoped memory for tpu_custom_call.1']
    #allocation5 [shape = 'u8[8192]{0}', space=vmem, size = 0x2000, scoped, tag = 'input window, operand 1, single buffered']
    #allocation6 [shape = 's32[1]{0}', space=sflag, size = 0x4, scoped, tag = 'scoped memory for tpu_custom_call.1']
    #allocation7 [shape = 'u8[8192]{0}', space=vmem, size = 0x2000, scoped, tag = 'input window, operand 2, single buffered']
    #allocation8 [shape = 'u8[8192]{0}', space=vmem, size = 0x2000, scoped, tag = 'input window, operand 3, single buffered']
    #allocation9 [shape = 's32[1]{0}', space=sflag, size = 0x4, scoped, tag = 'scoped memory for tpu_custom_call.1']
    #allocation10 [shape = 'u8[131072]{0}', space=vmem, size = 0x20000, scoped, tag = 'input window, operand 4, single buffered']
    #allocation11 [shape = 'u8[131072]{0}', space=vmem, size = 0x20000, scoped, tag = 'input window, operand 6, single buffered']
    #allocation12 [shape = 's32[1]{0}', space=sflag, size = 0x4, scoped, tag = 'scoped memory for tpu_custom_call.1']
    #allocation13 [shape = 'u8[65536]{0}', space=vmem, size = 0x10000, scoped, tag = 'input window, operand 8, single buffered']
    #allocation14 [shape = 'u8[8192]{0}', space=vmem, size = 0x2000, scoped, tag = 'output window, operand 0, single buffered']
    #allocation15 [shape = 'u8[8192]{0}', space=vmem, size = 0x2000, scoped, tag = 'output window, operand 1, single buffered']
    #allocation16 [shape = 's32[1]{0}', space=sflag, size = 0x4, scoped, tag = 'scoped memory for tpu_custom_call.1']
    #allocation17 [shape = 'u8[8192]{0}', space=vmem, size = 0x2000, scoped, tag = 'output window, operand 2, single buffered']
    #allocation18 [shape = 'u8[8192]{0}', space=vmem, size = 0x2000, scoped, tag = 'output window, operand 3, single buffered']
    #allocation19 [shape = 's32[1]{0}', space=sflag, size = 0x4, scoped, tag = 'scoped memory for tpu_custom_call.1']
    %19 = vsyncpa [#allocation3], 0
    %20 = vsyncpa [#allocation6], 0
    %21 = vsyncpa [#allocation9], 0
    %22 = vsyncpa [#allocation12], 0
    %23 = vsyncpa [#allocation4], 0
    %24 = vsyncpa [#allocation16], 0
    %25 = vsyncpa [#allocation19], 0
    // Predicated region
    $region2: #{tpu_custom_call.1} parent=1 // pred_check
      _
    $region3: #{tpu_custom_call.1} parent=1 // pred_check_branch
      %27 = sbr.rel (0) target = $region5
    $region4: #{tpu_custom_call.1} parent=1 // pred_region
      %s29 = ssub.s32 256, 256
      %30 = vsyncadd [#allocation3], %s29
      %s31 = sshll.u32 [#allocation2], 4
      %s32 = int_to_ptr.vmem [resolvable:$true] %s31
      %37 = dma.hbm_to_vmem [thread:$0]  %s0, 256, %s32, [#allocation3], 128, 128, 8
    $region5: #{tpu_custom_call.1} parent=1 // pred_fallthru
      _
    // Predicated region
    $region6: #{tpu_custom_call.1} parent=1 // pred_check
      _
    $region7: #{tpu_custom_call.1} parent=1 // pred_check_branch
      %39 = sbr.rel (0) target = $region9
    $region8: #{tpu_custom_call.1} parent=1 // pred_region
      %s41 = ssub.s32 256, 256
      %42 = vsyncadd [#allocation6], %s41
      %s43 = sshll.u32 [#allocation5], 4
      %s44 = int_to_ptr.vmem [resolvable:$true] %s43
      %49 = dma.hbm_to_vmem [thread:$0]  %s1, 256, %s44, [#allocation6], 128, 128, 8
    $region9: #{tpu_custom_call.1} parent=1 // pred_fallthru
      _
    // Predicated region
    $region10: #{tpu_custom_call.1} parent=1 // pred_check
      _
    $region11: #{tpu_custom_call.1} parent=1 // pred_check_branch
      %51 = sbr.rel (0) target = $region13
    $region12: #{tpu_custom_call.1} parent=1 // pred_region
      %s53 = ssub.s32 256, 256
      %54 = vsyncadd [#allocation6], %s53
      %s55 = sshll.u32 [#allocation7], 4
      %s56 = int_to_ptr.vmem [resolvable:$true] %s55
      %61 = dma.hbm_to_vmem [thread:$0]  %s2, 256, %s56, [#allocation6], 128, 128, 8
    $region13: #{tpu_custom_call.1} parent=1 // pred_fallthru
      _
    // Predicated region
    $region14: #{tpu_custom_call.1} parent=1 // pred_check
      _
    $region15: #{tpu_custom_call.1} parent=1 // pred_check_branch
      %63 = sbr.rel (0) target = $region17
    $region16: #{tpu_custom_call.1} parent=1 // pred_region
      %s65 = ssub.s32 256, 256
      %66 = vsyncadd [#allocation9], %s65
      %s67 = sshll.u32 [#allocation8], 4
      %s68 = int_to_ptr.vmem [resolvable:$true] %s67
      %73 = dma.hbm_to_vmem [thread:$0]  %s3, 256, %s68, [#allocation9], 128, 128, 8
    $region17: #{tpu_custom_call.1} parent=1 // pred_fallthru
      _
    // Predicated region
    $region18: #{tpu_custom_call.1} parent=1 // pred_check
      _
    $region19: #{tpu_custom_call.1} parent=1 // pred_check_branch
      %75 = sbr.rel (0) target = $region21
    $region20: #{tpu_custom_call.1} parent=1 // pred_region
      %s77 = ssub.s32 4096, 4096
      %78 = vsyncadd [#allocation9], %s77
      %s79 = sshll.u32 [#allocation10], 4
      %s80 = int_to_ptr.vmem [resolvable:$true] %s79
      %85 = dma.hbm_to_vmem [thread:$0]  %s4, 4096, %s80, [#allocation9], 64, 64, 4
    $region21: #{tpu_custom_call.1} parent=1 // pred_fallthru
      _
    // Predicated region
    $region22: #{tpu_custom_call.1} parent=1 // pred_check
      _
    $region23: #{tpu_custom_call.1} parent=1 // pred_check_branch
      %87 = sbr.rel (0) target = $region25
    $region24: #{tpu_custom_call.1} parent=1 // pred_region
      _
    $region25: #{tpu_custom_call.1} parent=1 // pred_fallthru
      _
    // Predicated region
    $region26: #{tpu_custom_call.1} parent=1 // pred_check
      _
    $region27: #{tpu_custom_call.1} parent=1 // pred_check_branch
      %89 = sbr.rel (0) target = $region29
    $region28: #{tpu_custom_call.1} parent=1 // pred_region
      %s91 = ssub.s32 4096, 4096
      %92 = vsyncadd [#allocation12], %s91
      %s93 = sshll.u32 [#allocation11], 4
      %s94 = int_to_ptr.vmem [resolvable:$true] %s93
      %99 = dma.hbm_to_vmem [thread:$0]  %s6, 4096, %s94, [#allocation12], 64, 64, 4
    $region29: #{tpu_custom_call.1} parent=1 // pred_fallthru
      _
    // Predicated region
    $region30: #{tpu_custom_call.1} parent=1 // pred_check
      _
    $region31: #{tpu_custom_call.1} parent=1 // pred_check_branch
      %101 = sbr.rel (0) target = $region33
    $region32: #{tpu_custom_call.1} parent=1 // pred_region
      _
    $region33: #{tpu_custom_call.1} parent=1 // pred_fallthru
      _
    // Predicated region
    $region34: #{tpu_custom_call.1} parent=1 // pred_check
      _
    $region35: #{tpu_custom_call.1} parent=1 // pred_check_branch
      %103 = sbr.rel (0) target = $region37
    $region36: #{tpu_custom_call.1} parent=1 // pred_region
      %s105 = ssub.s32 2048, 2048
      %106 = vsyncadd [#allocation12], %s105
      %s107 = sshll.u32 [#allocation13], 4
      %s108 = int_to_ptr.vmem [resolvable:$true] %s107
      %113 = dma.hbm_to_vmem [thread:$0]  %s8, 2048, %s108, [#allocation12], 128, 128, 8
    $region37: #{tpu_custom_call.1} parent=1 // pred_fallthru
      _
    // Predicated region
    $region38: #{tpu_custom_call.1} parent=1 // pred_check
      _
    $region39: #{tpu_custom_call.1} parent=1 // pred_check_branch
      %115 = sbr.rel (0) target = $region41
    $region40: #{tpu_custom_call.1} parent=1 // pred_region
      _
    $region41: #{tpu_custom_call.1} parent=1 // pred_fallthru
      _
    // Predicated region
    $region42: #{tpu_custom_call.1} parent=1 // pred_check
      _
    $region43: #{tpu_custom_call.1} parent=1 // pred_check_branch
      %117 = sbr.rel (0) target = $region45
    $region44: #{tpu_custom_call.1} parent=1 // pred_region
      %118 = dma.done [#allocation3], 256
    $region45: #{tpu_custom_call.1} parent=1 // pred_fallthru
      _
    // Predicated region
    $region46: #{tpu_custom_call.1} parent=1 // pred_check
      _
    $region47: #{tpu_custom_call.1} parent=1 // pred_check_branch
      %120 = sbr.rel (0) target = $region49
    $region48: #{tpu_custom_call.1} parent=1 // pred_region
      %121 = dma.done [#allocation6], 256
    $region49: #{tpu_custom_call.1} parent=1 // pred_fallthru
      _
    // Predicated region
    $region50: #{tpu_custom_call.1} parent=1 // pred_check
      _
    $region51: #{tpu_custom_call.1} parent=1 // pred_check_branch
      %123 = sbr.rel (0) target = $region53
    $region52: #{tpu_custom_call.1} parent=1 // pred_region
      %124 = dma.done [#allocation6], 256
    $region53: #{tpu_custom_call.1} parent=1 // pred_fallthru
      _
    // Predicated region
    $region54: #{tpu_custom_call.1} parent=1 // pred_check
      _
    $region55: #{tpu_custom_call.1} parent=1 // pred_check_branch
      %126 = sbr.rel (0) target = $region57
    $region56: #{tpu_custom_call.1} parent=1 // pred_region
      %127 = dma.done [#allocation9], 256
    $region57: #{tpu_custom_call.1} parent=1 // pred_fallthru
      _
    // Predicated region
    $region58: #{tpu_custom_call.1} parent=1 // pred_check
      _
    $region59: #{tpu_custom_call.1} parent=1 // pred_check_branch
      %129 = sbr.rel (0) target = $region61
    $region60: #{tpu_custom_call.1} parent=1 // pred_region
      %130 = dma.done [#allocation9], 4096
    $region61: #{tpu_custom_call.1} parent=1 // pred_fallthru
      _
    // Predicated region
    $region62: #{tpu_custom_call.1} parent=1 // pred_check
      _
    $region63: #{tpu_custom_call.1} parent=1 // pred_check_branch
      %132 = sbr.rel (0) target = $region65
    $region64: #{tpu_custom_call.1} parent=1 // pred_region
      %133 = dma.done [#allocation12], 4096
    $region65: #{tpu_custom_call.1} parent=1 // pred_fallthru
      _
    // Predicated region
    $region66: #{tpu_custom_call.1} parent=1 // pred_check
      _
    $region67: #{tpu_custom_call.1} parent=1 // pred_check_branch
      %135 = sbr.rel (0) target = $region69
    $region68: #{tpu_custom_call.1} parent=1 // pred_region
      %136 = dma.done [#allocation12], 2048
    $region69: #{tpu_custom_call.1} parent=1 // pred_fallthru
      _
    %v138 = vld [vmem:[#allocation2] sm:$0xff]
    %v139 = vld [vmem:[#allocation2 + $0x8] sm:$0xff]
    %v140 = vld [vmem:[#allocation7] sm:$0xff]
    %v141 = vld [vmem:[#allocation7 + $0x8] sm:$0xff]
    %v142 = vadd.f32 %v138, %v140
    %v143 = vadd.f32 %v139, %v141
    %v144 = vpack.c.bf16 %v143, %v142
    %v145 = vld [vmem:[#allocation10] sm:$0xf]
    %v146 = vld [vmem:[#allocation10 + $0x4] sm:$0xf]
    %v147 = vld [vmem:[#allocation10 + $0x8] sm:$0xf]
    %v148 = vld [vmem:[#allocation10 + $0xc] sm:$0xf]
    %v149 = vld [vmem:[#allocation10 + $0x10] sm:$0xf]
    %v150 = vld [vmem:[#allocation10 + $0x14] sm:$0xf]
    %v151 = vld [vmem:[#allocation10 + $0x18] sm:$0xf]
    %v152 = vld [vmem:[#allocation10 + $0x1c] sm:$0xf]
    %v153 = vld [vmem:[#allocation10 + $0x20] sm:$0xf]
    %v154 = vld [vmem:[#allocation10 + $0x24] sm:$0xf]
    %v155 = vld [vmem:[#allocation10 + $0x28] sm:$0xf]
    %v156 = vld [vmem:[#allocation10 + $0x2c] sm:$0xf]
    %v157 = vld [vmem:[#allocation10 + $0x30] sm:$0xf]
    %v158 = vld [vmem:[#allocation10 + $0x34] sm:$0xf]
    %v159 = vld [vmem:[#allocation10 + $0x38] sm:$0xf]
    %v160 = vld [vmem:[#allocation10 + $0x3c] sm:$0xf]
    %v161 = vld [vmem:[%s5] sm:$0x1]
    %v163 = vlaneseq
    %v164 = vshrl.u32 %v163, 7
    %v165 = vsub.s32 0, %v164
    %v166 = vrot.slane %v161, %v165
    %v184 = vunpack.c.l.b16 %v145
    %v185 = vunpack.c.l.b16 %v146
    %v186 = vunpack.c.l.b16 %v147
    %v187 = vunpack.c.l.b16 %v148
    %v188 = vunpack.c.l.b16 %v149
    %v189 = vunpack.c.l.b16 %v150
    %v190 = vunpack.c.l.b16 %v151
    %v191 = vunpack.c.l.b16 %v152
    %v192 = vunpack.c.l.b16 %v153
    %v193 = vunpack.c.l.b16 %v154
    %v194 = vunpack.c.l.b16 %v155
    %v195 = vunpack.c.l.b16 %v156
    %v196 = vunpack.c.l.b16 %v157
    %v197 = vunpack.c.l.b16 %v158
    %v198 = vunpack.c.l.b16 %v159
    %v199 = vunpack.c.l.b16 %v160
    %v200 = vpack.c.b16 %v185, %v184
    %v201 = vpack.c.b16 %v187, %v186
    %v202 = vpack.c.b16 %v189, %v188
    %v203 = vpack.c.b16 %v191, %v190
    %v204 = vpack.c.b16 %v193, %v192
    %v205 = vpack.c.b16 %v195, %v194
    %v206 = vpack.c.b16 %v197, %v196
    %v207 = vpack.c.b16 %v199, %v198
    %216 = vmatprep.subr.bf16.mxu0 0
    %217 = vmatpush1.bf16.msra.mxu0 %v200
    %218 = vmatprep.subr.bf16.mxu0 0
    %219 = vmatpush1.bf16.msra.mxu0 %v201
    %220 = vmatprep.subr.bf16.mxu0 0
    %221 = vmatpush1.bf16.msra.mxu0 %v202
    %222 = vmatprep.subr.bf16.mxu0 0
    %223 = vmatpush1.bf16.msra.mxu0 %v203
    %224 = vmatprep.subr.bf16.mxu0 0
    %225 = vmatpush1.bf16.msra.mxu0 %v204
    %226 = vmatprep.subr.bf16.mxu0 0
    %227 = vmatpush1.bf16.msra.mxu0 %v205
    %228 = vmatprep.subr.bf16.mxu0 0
    %229 = vmatpush1.bf16.msra.mxu0 %v206
    %230 = vmatprep.subr.bf16.mxu0 0
    %231 = vmatpush1.bf16.msra.mxu0 %v207
    %232 = vmatprep.subr.bf16.mxu0 0
    %233 = vmatpush1.bf16.msra.mxu0 0
    %234 = vmatprep.subr.bf16.mxu0 0
    %235 = vmatpush1.bf16.msra.mxu0 0
    %236 = vmatprep.subr.bf16.mxu0 0
    %237 = vmatpush1.bf16.msra.mxu0 0
    %238 = vmatprep.subr.bf16.mxu0 0
    %239 = vmatpush1.bf16.msra.mxu0 0
    %240 = vmatprep.subr.bf16.mxu0 0
    %241 = vmatpush1.bf16.msra.mxu0 0
    %242 = vmatprep.subr.bf16.mxu0 0
    %243 = vmatpush1.bf16.msra.mxu0 0
    %244 = vmatprep.subr.bf16.mxu0 0
    %245 = vmatpush1.bf16.msra.mxu0 0
    %246 = vmatprep.subr.bf16.mxu0 0
    %247 = vmatpush1.bf16.msra.mxu0 0
    %248 = vmatprep.mubr.bf16.mxu0 0
    %249 = vmatmul.mubr.bf16.gmra.mrb[0].mxu0 %v144
    %v250 = vpop.f32.mrb[0].mxu0
    %v251 = vadd.f32 %v166, %v250
    %v252 = vpop.f32.mrb[0].mxu0
    %v253 = vpop.f32.mrb[0].mxu0
    %v254 = vadd.f32 %v166, %v253
    %v255 = vpop.f32.mrb[0].mxu0
    %256 = vdwg.mxu0
    %v257 = vmax.f32 %v251, 0.0
    %v258 = vmax.f32 %v254, 0.0
    %v259 = vpack.c.bf16 %v258, %v257
    %s260 = scalar_lea.vmem [#allocation10], 64
    %v261 = vld [vmem:[%s260] sm:$0xf]
    %v262 = vld [vmem:[%s260 + $0x4] sm:$0xf]
    %v263 = vld [vmem:[%s260 + $0x8] sm:$0xf]
    %v264 = vld [vmem:[%s260 + $0xc] sm:$0xf]
    %v265 = vld [vmem:[%s260 + $0x10] sm:$0xf]
    %v266 = vld [vmem:[%s260 + $0x14] sm:$0xf]
    %v267 = vld [vmem:[%s260 + $0x18] sm:$0xf]
    %v268 = vld [vmem:[%s260 + $0x1c] sm:$0xf]
    %v269 = vld [vmem:[%s260 + $0x20] sm:$0xf]
    %v270 = vld [vmem:[%s260 + $0x24] sm:$0xf]
    %v271 = vld [vmem:[%s260 + $0x28] sm:$0xf]
    %v272 = vld [vmem:[%s260 + $0x2c] sm:$0xf]
    %v273 = vld [vmem:[%s260 + $0x30] sm:$0xf]
    %v274 = vld [vmem:[%s260 + $0x34] sm:$0xf]
    %v275 = vld [vmem:[%s260 + $0x38] sm:$0xf]
    %v276 = vld [vmem:[%s260 + $0x3c] sm:$0xf]
    %s277 = scalar_lea.vmem %s5, 1
    %v278 = vld [vmem:[%s277] sm:$0x1]
    %v280 = vlaneseq
    %v281 = vshrl.u32 %v280, 7
    %v282 = vsub.s32 0, %v281
    %v283 = vrot.slane %v278, %v282
    %v301 = vunpack.c.l.b16 %v261
    %v302 = vunpack.c.l.b16 %v262
    %v303 = vunpack.c.l.b16 %v263
    %v304 = vunpack.c.l.b16 %v264
    %v305 = vunpack.c.l.b16 %v265
    %v306 = vunpack.c.l.b16 %v266
    %v307 = vunpack.c.l.b16 %v267
    %v308 = vunpack.c.l.b16 %v268
    %v309 = vunpack.c.l.b16 %v269
    %v310 = vunpack.c.l.b16 %v270
    %v311 = vunpack.c.l.b16 %v271
    %v312 = vunpack.c.l.b16 %v272
    %v313 = vunpack.c.l.b16 %v273
    %v314 = vunpack.c.l.b16 %v274
    %v315 = vunpack.c.l.b16 %v275
    %v316 = vunpack.c.l.b16 %v276
    %v317 = vpack.c.b16 %v302, %v301
    %v318 = vpack.c.b16 %v304, %v303
    %v319 = vpack.c.b16 %v306, %v305
    %v320 = vpack.c.b16 %v308, %v307
    %v321 = vpack.c.b16 %v310, %v309
    %v322 = vpack.c.b16 %v312, %v311
    %v323 = vpack.c.b16 %v314, %v313
    %v324 = vpack.c.b16 %v316, %v315
    %333 = vmatprep.subr.bf16.mxu0 0
    %334 = vmatpush1.bf16.msra.mxu0 %v317
    %335 = vmatprep.subr.bf16.mxu0 0
    %336 = vmatpush1.bf16.msra.mxu0 %v318
    %337 = vmatprep.subr.bf16.mxu0 0
    %338 = vmatpush1.bf16.msra.mxu0 %v319
    %339 = vmatprep.subr.bf16.mxu0 0
    %340 = vmatpush1.bf16.msra.mxu0 %v320
    %341 = vmatprep.subr.bf16.mxu0 0
    %342 = vmatpush1.bf16.msra.mxu0 %v321
    %343 = vmatprep.subr.bf16.mxu0 0
    %344 = vmatpush1.bf16.msra.mxu0 %v322
    %345 = vmatprep.subr.bf16.mxu0 0
    %346 = vmatpush1.bf16.msra.mxu0 %v323
    %347 = vmatprep.subr.bf16.mxu0 0
    %348 = vmatpush1.bf16.msra.mxu0 %v324
    %349 = vmatprep.subr.bf16.mxu0 0
    %350 = vmatpush1.bf16.msra.mxu0 0
    %351 = vmatprep.subr.bf16.mxu0 0
    %352 = vmatpush1.bf16.msra.mxu0 0
    %353 = vmatprep.subr.bf16.mxu0 0
    %354 = vmatpush1.bf16.msra.mxu0 0
    %355 = vmatprep.subr.bf16.mxu0 0
    %356 = vmatpush1.bf16.msra.mxu0 0
    %357 = vmatprep.subr.bf16.mxu0 0
    %358 = vmatpush1.bf16.msra.mxu0 0
    %359 = vmatprep.subr.bf16.mxu0 0
    %360 = vmatpush1.bf16.msra.mxu0 0
    %361 = vmatprep.subr.bf16.mxu0 0
    %362 = vmatpush1.bf16.msra.mxu0 0
    %363 = vmatprep.subr.bf16.mxu0 0
    %364 = vmatpush1.bf16.msra.mxu0 0
    %365 = vmatprep.mubr.bf16.mxu0 0
    %366 = vmatmul.mubr.bf16.gmra.mrb[0].mxu0 %v259
    %v367 = vpop.f32.mrb[0].mxu0
    %v368 = vadd.f32 %v283, %v367
    %v369 = vpop.f32.mrb[0].mxu0
    %v370 = vpop.f32.mrb[0].mxu0
    %v371 = vadd.f32 %v283, %v370
    %v372 = vpop.f32.mrb[0].mxu0
    %373 = vdwg.mxu0
    %v374 = vmax.f32 %v368, 0.0
    %v375 = vmax.f32 %v371, 0.0
    %v376 = vpack.c.bf16 %v375, %v374
    %s377 = scalar_lea.vmem [#allocation10], 128
    %v378 = vld [vmem:[%s377] sm:$0xf]
    %v379 = vld [vmem:[%s377 + $0x4] sm:$0xf]
    %v380 = vld [vmem:[%s377 + $0x8] sm:$0xf]
    %v381 = vld [vmem:[%s377 + $0xc] sm:$0xf]
    %v382 = vld [vmem:[%s377 + $0x10] sm:$0xf]
    %v383 = vld [vmem:[%s377 + $0x14] sm:$0xf]
    %v384 = vld [vmem:[%s377 + $0x18] sm:$0xf]
    %v385 = vld [vmem:[%s377 + $0x1c] sm:$0xf]
    %v386 = vld [vmem:[%s377 + $0x20] sm:$0xf]
    %v387 = vld [vmem:[%s377 + $0x24] sm:$0xf]
    %v388 = vld [vmem:[%s377 + $0x28] sm:$0xf]
    %v389 = vld [vmem:[%s377 + $0x2c] sm:$0xf]
    %v390 = vld [vmem:[%s377 + $0x30] sm:$0xf]
    %v391 = vld [vmem:[%s377 + $0x34] sm:$0xf]
    %v392 = vld [vmem:[%s377 + $0x38] sm:$0xf]
    %v393 = vld [vmem:[%s377 + $0x3c] sm:$0xf]
    %s394 = scalar_lea.vmem %s5, 2
    %v395 = vld [vmem:[%s394] sm:$0x1]
    %v397 = vlaneseq
    %v398 = vshrl.u32 %v397, 7
    %v399 = vsub.s32 0, %v398
    %v400 = vrot.slane %v395, %v399
    %v418 = vunpack.c.l.b16 %v378
    %v419 = vunpack.c.l.b16 %v379
    %v420 = vunpack.c.l.b16 %v380
    %v421 = vunpack.c.l.b16 %v381
    %v422 = vunpack.c.l.b16 %v382
    %v423 = vunpack.c.l.b16 %v383
    %v424 = vunpack.c.l.b16 %v384
    %v425 = vunpack.c.l.b16 %v385
    %v426 = vunpack.c.l.b16 %v386
    %v427 = vunpack.c.l.b16 %v387
    %v428 = vunpack.c.l.b16 %v388
    %v429 = vunpack.c.l.b16 %v389
    %v430 = vunpack.c.l.b16 %v390
    %v431 = vunpack.c.l.b16 %v391
    %v432 = vunpack.c.l.b16 %v392
    %v433 = vunpack.c.l.b16 %v393
    %v434 = vpack.c.b16 %v419, %v418
    %v435 = vpack.c.b16 %v421, %v420
    %v436 = vpack.c.b16 %v423, %v422
    %v437 = vpack.c.b16 %v425, %v424
    %v438 = vpack.c.b16 %v427, %v426
    %v439 = vpack.c.b16 %v429, %v428
    %v440 = vpack.c.b16 %v431, %v430
    %v441 = vpack.c.b16 %v433, %v432
    %450 = vmatprep.subr.bf16.mxu0 0
    %451 = vmatpush1.bf16.msra.mxu0 %v434
    %452 = vmatprep.subr.bf16.mxu0 0
    %453 = vmatpush1.bf16.msra.mxu0 %v435
    %454 = vmatprep.subr.bf16.mxu0 0
    %455 = vmatpush1.bf16.msra.mxu0 %v436
    %456 = vmatprep.subr.bf16.mxu0 0
    %457 = vmatpush1.bf16.msra.mxu0 %v437
    %458 = vmatprep.subr.bf16.mxu0 0
    %459 = vmatpush1.bf16.msra.mxu0 %v438
    %460 = vmatprep.subr.bf16.mxu0 0
    %461 = vmatpush1.bf16.msra.mxu0 %v439
    %462 = vmatprep.subr.bf16.mxu0 0
    %463 = vmatpush1.bf16.msra.mxu0 %v440
    %464 = vmatprep.subr.bf16.mxu0 0
    %465 = vmatpush1.bf16.msra.mxu0 %v441
    %466 = vmatprep.subr.bf16.mxu0 0
    %467 = vmatpush1.bf16.msra.mxu0 0
    %468 = vmatprep.subr.bf16.mxu0 0
    %469 = vmatpush1.bf16.msra.mxu0 0
    %470 = vmatprep.subr.bf16.mxu0 0
    %471 = vmatpush1.bf16.msra.mxu0 0
    %472 = vmatprep.subr.bf16.mxu0 0
    %473 = vmatpush1.bf16.msra.mxu0 0
    %474 = vmatprep.subr.bf16.mxu0 0
    %475 = vmatpush1.bf16.msra.mxu0 0
    %476 = vmatprep.subr.bf16.mxu0 0
    %477 = vmatpush1.bf16.msra.mxu0 0
    %478 = vmatprep.subr.bf16.mxu0 0
    %479 = vmatpush1.bf16.msra.mxu0 0
    %480 = vmatprep.subr.bf16.mxu0 0
    %481 = vmatpush1.bf16.msra.mxu0 0
    %482 = vmatprep.mubr.bf16.mxu0 0
    %483 = vmatmul.mubr.bf16.gmra.mrb[0].mxu0 %v376
    %v484 = vpop.f32.mrb[0].mxu0
    %v485 = vadd.f32 %v400, %v484
    %v486 = vpop.f32.mrb[0].mxu0
    %v487 = vpop.f32.mrb[0].mxu0
    %v488 = vadd.f32 %v400, %v487
    %v489 = vpop.f32.mrb[0].mxu0
    %490 = vdwg.mxu0
    %v491 = vmax.f32 %v485, 0.0
    %v492 = vmax.f32 %v488, 0.0
    %v493 = vpack.c.bf16 %v492, %v491
    %s494 = scalar_lea.vmem [#allocation10], 192
    %v495 = vld [vmem:[%s494] sm:$0xf]
    %v496 = vld [vmem:[%s494 + $0x4] sm:$0xf]
    %v497 = vld [vmem:[%s494 + $0x8] sm:$0xf]
    %v498 = vld [vmem:[%s494 + $0xc] sm:$0xf]
    %v499 = vld [vmem:[%s494 + $0x10] sm:$0xf]
    %v500 = vld [vmem:[%s494 + $0x14] sm:$0xf]
    %v501 = vld [vmem:[%s494 + $0x18] sm:$0xf]
    %v502 = vld [vmem:[%s494 + $0x1c] sm:$0xf]
    %v503 = vld [vmem:[%s494 + $0x20] sm:$0xf]
    %v504 = vld [vmem:[%s494 + $0x24] sm:$0xf]
    %v505 = vld [vmem:[%s494 + $0x28] sm:$0xf]
    %v506 = vld [vmem:[%s494 + $0x2c] sm:$0xf]
    %v507 = vld [vmem:[%s494 + $0x30] sm:$0xf]
    %v508 = vld [vmem:[%s494 + $0x34] sm:$0xf]
    %v509 = vld [vmem:[%s494 + $0x38] sm:$0xf]
    %v510 = vld [vmem:[%s494 + $0x3c] sm:$0xf]
    %s511 = scalar_lea.vmem %s5, 3
    %v512 = vld [vmem:[%s511] sm:$0x1]
    %v514 = vlaneseq
    %v515 = vshrl.u32 %v514, 7
    %v516 = vsub.s32 0, %v515
    %v517 = vrot.slane %v512, %v516
    %v535 = vunpack.c.l.b16 %v495
    %v536 = vunpack.c.l.b16 %v496
    %v537 = vunpack.c.l.b16 %v497
    %v538 = vunpack.c.l.b16 %v498
    %v539 = vunpack.c.l.b16 %v499
    %v540 = vunpack.c.l.b16 %v500
    %v541 = vunpack.c.l.b16 %v501
    %v542 = vunpack.c.l.b16 %v502
    %v543 = vunpack.c.l.b16 %v503
    %v544 = vunpack.c.l.b16 %v504
    %v545 = vunpack.c.l.b16 %v505
    %v546 = vunpack.c.l.b16 %v506
    %v547 = vunpack.c.l.b16 %v507
    %v548 = vunpack.c.l.b16 %v508
    %v549 = vunpack.c.l.b16 %v509
    %v550 = vunpack.c.l.b16 %v510
    %v551 = vpack.c.b16 %v536, %v535
    %v552 = vpack.c.b16 %v538, %v537
    %v553 = vpack.c.b16 %v540, %v539
    %v554 = vpack.c.b16 %v542, %v541
    %v555 = vpack.c.b16 %v544, %v543
    %v556 = vpack.c.b16 %v546, %v545
    %v557 = vpack.c.b16 %v548, %v547
    %v558 = vpack.c.b16 %v550, %v549
    %567 = vmatprep.subr.bf16.mxu0 0
    %568 = vmatpush1.bf16.msra.mxu0 %v551
    %569 = vmatprep.subr.bf16.mxu0 0
    %570 = vmatpush1.bf16.msra.mxu0 %v552
    %571 = vmatprep.subr.bf16.mxu0 0
    %572 = vmatpush1.bf16.msra.mxu0 %v553
    %573 = vmatprep.subr.bf16.mxu0 0
    %574 = vmatpush1.bf16.msra.mxu0 %v554
    %575 = vmatprep.subr.bf16.mxu0 0
    %576 = vmatpush1.bf16.msra.mxu0 %v555
    %577 = vmatprep.subr.bf16.mxu0 0
    %578 = vmatpush1.bf16.msra.mxu0 %v556
    %579 = vmatprep.subr.bf16.mxu0 0
    %580 = vmatpush1.bf16.msra.mxu0 %v557
    %581 = vmatprep.subr.bf16.mxu0 0
    %582 = vmatpush1.bf16.msra.mxu0 %v558
    %583 = vmatprep.subr.bf16.mxu0 0
    %584 = vmatpush1.bf16.msra.mxu0 0
    %585 = vmatprep.subr.bf16.mxu0 0
    %586 = vmatpush1.bf16.msra.mxu0 0
    %587 = vmatprep.subr.bf16.mxu0 0
    %588 = vmatpush1.bf16.msra.mxu0 0
    %589 = vmatprep.subr.bf16.mxu0 0
    %590 = vmatpush1.bf16.msra.mxu0 0
    %591 = vmatprep.subr.bf16.mxu0 0
    %592 = vmatpush1.bf16.msra.mxu0 0
    %593 = vmatprep.subr.bf16.mxu0 0
    %594 = vmatpush1.bf16.msra.mxu0 0
    %595 = vmatprep.subr.bf16.mxu0 0
    %596 = vmatpush1.bf16.msra.mxu0 0
    %597 = vmatprep.subr.bf16.mxu0 0
    %598 = vmatpush1.bf16.msra.mxu0 0
    %599 = vmatprep.mubr.bf16.mxu0 0
    %600 = vmatmul.mubr.bf16.gmra.mrb[0].mxu0 %v493
    %v601 = vpop.f32.mrb[0].mxu0
    %v602 = vadd.f32 %v517, %v601
    %v603 = vpop.f32.mrb[0].mxu0
    %v604 = vpop.f32.mrb[0].mxu0
    %v605 = vadd.f32 %v517, %v604
    %v606 = vpop.f32.mrb[0].mxu0
    %607 = vdwg.mxu0
    %v608 = vmax.f32 %v602, 0.0
    %v609 = vmax.f32 %v605, 0.0
    %v610 = vld [vmem:[#allocation5] sm:$0xff]
    %v611 = vld [vmem:[#allocation5 + $0x8] sm:$0xff]
    %v612 = vtanh.pop %v610
    %v613 = vtanh.pop %v611
    %v614 = vadd.f32 %v612, 1.0
    %v615 = vadd.f32 %v613, 1.0
    %v616 = vmul.f32 %v608, %v614
    %v617 = vmul.f32 %v609, %v615
    %618 = vst [vmem:[#allocation14] sm:$0xff] %v616
    %619 = vst [vmem:[#allocation14 + $0x8] sm:$0xff] %v617
    %v620 = vld [vmem:[#allocation8] sm:$0xff]
    %v621 = vld [vmem:[#allocation8 + $0x8] sm:$0xff]
    %v622 = vmul.f32 %v616, %v620
    %v623 = vmul.f32 %v617, %v621
    %v624 = vpack.c.bf16 %v623, %v622
    %v625 = vld [vmem:[#allocation11] sm:$0xf]
    %v626 = vld [vmem:[#allocation11 + $0x4] sm:$0xf]
    %v627 = vld [vmem:[#allocation11 + $0x8] sm:$0xf]
    %v628 = vld [vmem:[#allocation11 + $0xc] sm:$0xf]
    %v629 = vld [vmem:[#allocation11 + $0x10] sm:$0xf]
    %v630 = vld [vmem:[#allocation11 + $0x14] sm:$0xf]
    %v631 = vld [vmem:[#allocation11 + $0x18] sm:$0xf]
    %v632 = vld [vmem:[#allocation11 + $0x1c] sm:$0xf]
    %v633 = vld [vmem:[#allocation11 + $0x20] sm:$0xf]
    %v634 = vld [vmem:[#allocation11 + $0x24] sm:$0xf]
    %v635 = vld [vmem:[#allocation11 + $0x28] sm:$0xf]
    %v636 = vld [vmem:[#allocation11 + $0x2c] sm:$0xf]
    %v637 = vld [vmem:[#allocation11 + $0x30] sm:$0xf]
    %v638 = vld [vmem:[#allocation11 + $0x34] sm:$0xf]
    %v639 = vld [vmem:[#allocation11 + $0x38] sm:$0xf]
    %v640 = vld [vmem:[#allocation11 + $0x3c] sm:$0xf]
    %v641 = vld [vmem:[%s7] sm:$0x1]
    %v643 = vlaneseq
    %v644 = vshrl.u32 %v643, 7
    %v645 = vsub.s32 0, %v644
    %v646 = vrot.slane %v641, %v645
    %v664 = vunpack.c.l.b16 %v625
    %v665 = vunpack.c.l.b16 %v626
    %v666 = vunpack.c.l.b16 %v627
    %v667 = vunpack.c.l.b16 %v628
    %v668 = vunpack.c.l.b16 %v629
    %v669 = vunpack.c.l.b16 %v630
    %v670 = vunpack.c.l.b16 %v631
    %v671 = vunpack.c.l.b16 %v632
    %v672 = vunpack.c.l.b16 %v633
    %v673 = vunpack.c.l.b16 %v634
    %v674 = vunpack.c.l.b16 %v635
    %v675 = vunpack.c.l.b16 %v636
    %v676 = vunpack.c.l.b16 %v637
    %v677 = vunpack.c.l.b16 %v638
    %v678 = vunpack.c.l.b16 %v639
    %v679 = vunpack.c.l.b16 %v640
    %v680 = vpack.c.b16 %v665, %v664
    %v681 = vpack.c.b16 %v667, %v666
    %v682 = vpack.c.b16 %v669, %v668
    %v683 = vpack.c.b16 %v671, %v670
    %v684 = vpack.c.b16 %v673, %v672
    %v685 = vpack.c.b16 %v675, %v674
    %v686 = vpack.c.b16 %v677, %v676
    %v687 = vpack.c.b16 %v679, %v678
    %696 = vmatprep.subr.bf16.mxu0 0
    %697 = vmatpush1.bf16.msra.mxu0 %v680
    %698 = vmatprep.subr.bf16.mxu0 0
    %699 = vmatpush1.bf16.msra.mxu0 %v681
    %700 = vmatprep.subr.bf16.mxu0 0
    %701 = vmatpush1.bf16.msra.mxu0 %v682
    %702 = vmatprep.subr.bf16.mxu0 0
    %703 = vmatpush1.bf16.msra.mxu0 %v683
    %704 = vmatprep.subr.bf16.mxu0 0
    %705 = vmatpush1.bf16.msra.mxu0 %v684
    %706 = vmatprep.subr.bf16.mxu0 0
    %707 = vmatpush1.bf16.msra.mxu0 %v685
    %708 = vmatprep.subr.bf16.mxu0 0
    %709 = vmatpush1.bf16.msra.mxu0 %v686
    %710 = vmatprep.subr.bf16.mxu0 0
    %711 = vmatpush1.bf16.msra.mxu0 %v687
    %712 = vmatprep.subr.bf16.mxu0 0
    %713 = vmatpush1.bf16.msra.mxu0 0
    %714 = vmatprep.subr.bf16.mxu0 0
    %715 = vmatpush1.bf16.msra.mxu0 0
    %716 = vmatprep.subr.bf16.mxu0 0
    %717 = vmatpush1.bf16.msra.mxu0 0
    %718 = vmatprep.subr.bf16.mxu0 0
    %719 = vmatpush1.bf16.msra.mxu0 0
    %720 = vmatprep.subr.bf16.mxu0 0
    %721 = vmatpush1.bf16.msra.mxu0 0
    %722 = vmatprep.subr.bf16.mxu0 0
    %723 = vmatpush1.bf16.msra.mxu0 0
    %724 = vmatprep.subr.bf16.mxu0 0
    %725 = vmatpush1.bf16.msra.mxu0 0
    %726 = vmatprep.subr.bf16.mxu0 0
    %727 = vmatpush1.bf16.msra.mxu0 0
    %728 = vmatprep.mubr.bf16.mxu0 0
    %729 = vmatmul.mubr.bf16.gmra.mrb[0].mxu0 %v624
    %v730 = vpop.f32.mrb[0].mxu0
    %v731 = vadd.f32 %v646, %v730
    %v732 = vpop.f32.mrb[0].mxu0
    %v733 = vpop.f32.mrb[0].mxu0
    %v734 = vadd.f32 %v646, %v733
    %v735 = vpop.f32.mrb[0].mxu0
    %736 = vdwg.mxu0
    %v737 = vtanh.pop %v731
    %v738 = vtanh.pop %v734
    %v739 = vmul.f32 %v737, %v620
    %v740 = vmul.f32 %v738, %v621
    %v741 = vpack.c.bf16 %v740, %v739
    %s742 = scalar_lea.vmem [#allocation11], 64
    %v743 = vld [vmem:[%s742] sm:$0xf]
    %v744 = vld [vmem:[%s742 + $0x4] sm:$0xf]
    %v745 = vld [vmem:[%s742 + $0x8] sm:$0xf]
    %v746 = vld [vmem:[%s742 + $0xc] sm:$0xf]
    %v747 = vld [vmem:[%s742 + $0x10] sm:$0xf]
    %v748 = vld [vmem:[%s742 + $0x14] sm:$0xf]
    %v749 = vld [vmem:[%s742 + $0x18] sm:$0xf]
    %v750 = vld [vmem:[%s742 + $0x1c] sm:$0xf]
    %v751 = vld [vmem:[%s742 + $0x20] sm:$0xf]
    %v752 = vld [vmem:[%s742 + $0x24] sm:$0xf]
    %v753 = vld [vmem:[%s742 + $0x28] sm:$0xf]
    %v754 = vld [vmem:[%s742 + $0x2c] sm:$0xf]
    %v755 = vld [vmem:[%s742 + $0x30] sm:$0xf]
    %v756 = vld [vmem:[%s742 + $0x34] sm:$0xf]
    %v757 = vld [vmem:[%s742 + $0x38] sm:$0xf]
    %v758 = vld [vmem:[%s742 + $0x3c] sm:$0xf]
    %s759 = scalar_lea.vmem %s7, 1
    %v760 = vld [vmem:[%s759] sm:$0x1]
    %v762 = vlaneseq
    %v763 = vshrl.u32 %v762, 7
    %v764 = vsub.s32 0, %v763
    %v765 = vrot.slane %v760, %v764
    %v783 = vunpack.c.l.b16 %v743
    %v784 = vunpack.c.l.b16 %v744
    %v785 = vunpack.c.l.b16 %v745
    %v786 = vunpack.c.l.b16 %v746
    %v787 = vunpack.c.l.b16 %v747
    %v788 = vunpack.c.l.b16 %v748
    %v789 = vunpack.c.l.b16 %v749
    %v790 = vunpack.c.l.b16 %v750
    %v791 = vunpack.c.l.b16 %v751
    %v792 = vunpack.c.l.b16 %v752
    %v793 = vunpack.c.l.b16 %v753
    %v794 = vunpack.c.l.b16 %v754
    %v795 = vunpack.c.l.b16 %v755
    %v796 = vunpack.c.l.b16 %v756
    %v797 = vunpack.c.l.b16 %v757
    %v798 = vunpack.c.l.b16 %v758
    %v799 = vpack.c.b16 %v784, %v783
    %v800 = vpack.c.b16 %v786, %v785
    %v801 = vpack.c.b16 %v788, %v787
    %v802 = vpack.c.b16 %v790, %v789
    %v803 = vpack.c.b16 %v792, %v791
    %v804 = vpack.c.b16 %v794, %v793
    %v805 = vpack.c.b16 %v796, %v795
    %v806 = vpack.c.b16 %v798, %v797
    %815 = vmatprep.subr.bf16.mxu0 0
    %816 = vmatpush1.bf16.msra.mxu0 %v799
    %817 = vmatprep.subr.bf16.mxu0 0
    %818 = vmatpush1.bf16.msra.mxu0 %v800
    %819 = vmatprep.subr.bf16.mxu0 0
    %820 = vmatpush1.bf16.msra.mxu0 %v801
    %821 = vmatprep.subr.bf16.mxu0 0
    %822 = vmatpush1.bf16.msra.mxu0 %v802
    %823 = vmatprep.subr.bf16.mxu0 0
    %824 = vmatpush1.bf16.msra.mxu0 %v803
    %825 = vmatprep.subr.bf16.mxu0 0
    %826 = vmatpush1.bf16.msra.mxu0 %v804
    %827 = vmatprep.subr.bf16.mxu0 0
    %828 = vmatpush1.bf16.msra.mxu0 %v805
    %829 = vmatprep.subr.bf16.mxu0 0
    %830 = vmatpush1.bf16.msra.mxu0 %v806
    %831 = vmatprep.subr.bf16.mxu0 0
    %832 = vmatpush1.bf16.msra.mxu0 0
    %833 = vmatprep.subr.bf16.mxu0 0
    %834 = vmatpush1.bf16.msra.mxu0 0
    %835 = vmatprep.subr.bf16.mxu0 0
    %836 = vmatpush1.bf16.msra.mxu0 0
    %837 = vmatprep.subr.bf16.mxu0 0
    %838 = vmatpush1.bf16.msra.mxu0 0
    %839 = vmatprep.subr.bf16.mxu0 0
    %840 = vmatpush1.bf16.msra.mxu0 0
    %841 = vmatprep.subr.bf16.mxu0 0
    %842 = vmatpush1.bf16.msra.mxu0 0
    %843 = vmatprep.subr.bf16.mxu0 0
    %844 = vmatpush1.bf16.msra.mxu0 0
    %845 = vmatprep.subr.bf16.mxu0 0
    %846 = vmatpush1.bf16.msra.mxu0 0
    %847 = vmatprep.mubr.bf16.mxu0 0
    %848 = vmatmul.mubr.bf16.gmra.mrb[0].mxu0 %v741
    %v849 = vpop.f32.mrb[0].mxu0
    %v850 = vadd.f32 %v765, %v849
    %v851 = vpop.f32.mrb[0].mxu0
    %v852 = vpop.f32.mrb[0].mxu0
    %v853 = vadd.f32 %v765, %v852
    %v854 = vpop.f32.mrb[0].mxu0
    %855 = vdwg.mxu0
    %v856 = vtanh.pop %v850
    %v857 = vtanh.pop %v853
    %v858 = vmul.f32 %v856, %v620
    %v859 = vmul.f32 %v857, %v621
    %v860 = vpack.c.bf16 %v859, %v858
    %s861 = scalar_lea.vmem [#allocation11], 128
    %v862 = vld [vmem:[%s861] sm:$0xf]
    %v863 = vld [vmem:[%s861 + $0x4] sm:$0xf]
    %v864 = vld [vmem:[%s861 + $0x8] sm:$0xf]
    %v865 = vld [vmem:[%s861 + $0xc] sm:$0xf]
    %v866 = vld [vmem:[%s861 + $0x10] sm:$0xf]
    %v867 = vld [vmem:[%s861 + $0x14] sm:$0xf]
    %v868 = vld [vmem:[%s861 + $0x18] sm:$0xf]
    %v869 = vld [vmem:[%s861 + $0x1c] sm:$0xf]
    %v870 = vld [vmem:[%s861 + $0x20] sm:$0xf]
    %v871 = vld [vmem:[%s861 + $0x24] sm:$0xf]
    %v872 = vld [vmem:[%s861 + $0x28] sm:$0xf]
    %v873 = vld [vmem:[%s861 + $0x2c] sm:$0xf]
    %v874 = vld [vmem:[%s861 + $0x30] sm:$0xf]
    %v875 = vld [vmem:[%s861 + $0x34] sm:$0xf]
    %v876 = vld [vmem:[%s861 + $0x38] sm:$0xf]
    %v877 = vld [vmem:[%s861 + $0x3c] sm:$0xf]
    %s878 = scalar_lea.vmem %s7, 2
    %v879 = vld [vmem:[%s878] sm:$0x1]
    %v881 = vlaneseq
    %v882 = vshrl.u32 %v881, 7
    %v883 = vsub.s32 0, %v882
    %v884 = vrot.slane %v879, %v883
    %v902 = vunpack.c.l.b16 %v862
    %v903 = vunpack.c.l.b16 %v863
    %v904 = vunpack.c.l.b16 %v864
    %v905 = vunpack.c.l.b16 %v865
    %v906 = vunpack.c.l.b16 %v866
    %v907 = vunpack.c.l.b16 %v867
    %v908 = vunpack.c.l.b16 %v868
    %v909 = vunpack.c.l.b16 %v869
    %v910 = vunpack.c.l.b16 %v870
    %v911 = vunpack.c.l.b16 %v871
    %v912 = vunpack.c.l.b16 %v872
    %v913 = vunpack.c.l.b16 %v873
    %v914 = vunpack.c.l.b16 %v874
    %v915 = vunpack.c.l.b16 %v875
    %v916 = vunpack.c.l.b16 %v876
    %v917 = vunpack.c.l.b16 %v877
    %v918 = vpack.c.b16 %v903, %v902
    %v919 = vpack.c.b16 %v905, %v904
    %v920 = vpack.c.b16 %v907, %v906
    %v921 = vpack.c.b16 %v909, %v908
    %v922 = vpack.c.b16 %v911, %v910
    %v923 = vpack.c.b16 %v913, %v912
    %v924 = vpack.c.b16 %v915, %v914
    %v925 = vpack.c.b16 %v917, %v916
    %934 = vmatprep.subr.bf16.mxu0 0
    %935 = vmatpush1.bf16.msra.mxu0 %v918
    %936 = vmatprep.subr.bf16.mxu0 0
    %937 = vmatpush1.bf16.msra.mxu0 %v919
    %938 = vmatprep.subr.bf16.mxu0 0
    %939 = vmatpush1.bf16.msra.mxu0 %v920
    %940 = vmatprep.subr.bf16.mxu0 0
    %941 = vmatpush1.bf16.msra.mxu0 %v921
    %942 = vmatprep.subr.bf16.mxu0 0
    %943 = vmatpush1.bf16.msra.mxu0 %v922
    %944 = vmatprep.subr.bf16.mxu0 0
    %945 = vmatpush1.bf16.msra.mxu0 %v923
    %946 = vmatprep.subr.bf16.mxu0 0
    %947 = vmatpush1.bf16.msra.mxu0 %v924
    %948 = vmatprep.subr.bf16.mxu0 0
    %949 = vmatpush1.bf16.msra.mxu0 %v925
    %950 = vmatprep.subr.bf16.mxu0 0
    %951 = vmatpush1.bf16.msra.mxu0 0
    %952 = vmatprep.subr.bf16.mxu0 0
    %953 = vmatpush1.bf16.msra.mxu0 0
    %954 = vmatprep.subr.bf16.mxu0 0
    %955 = vmatpush1.bf16.msra.mxu0 0
    %956 = vmatprep.subr.bf16.mxu0 0
    %957 = vmatpush1.bf16.msra.mxu0 0
    %958 = vmatprep.subr.bf16.mxu0 0
    %959 = vmatpush1.bf16.msra.mxu0 0
    %960 = vmatprep.subr.bf16.mxu0 0
    %961 = vmatpush1.bf16.msra.mxu0 0
    %962 = vmatprep.subr.bf16.mxu0 0
    %963 = vmatpush1.bf16.msra.mxu0 0
    %964 = vmatprep.subr.bf16.mxu0 0
    %965 = vmatpush1.bf16.msra.mxu0 0
    %966 = vmatprep.mubr.bf16.mxu0 0
    %967 = vmatmul.mubr.bf16.gmra.mrb[0].mxu0 %v860
    %v968 = vpop.f32.mrb[0].mxu0
    %v969 = vadd.f32 %v884, %v968
    %v970 = vpop.f32.mrb[0].mxu0
    %v971 = vpop.f32.mrb[0].mxu0
    %v972 = vadd.f32 %v884, %v971
    %v973 = vpop.f32.mrb[0].mxu0
    %974 = vdwg.mxu0
    %v975 = vtanh.pop %v969
    %v976 = vtanh.pop %v972
    %v977 = vmul.f32 %v975, %v620
    %v978 = vmul.f32 %v976, %v621
    %v979 = vpack.c.bf16 %v978, %v977
    %s980 = scalar_lea.vmem [#allocation11], 192
    %v981 = vld [vmem:[%s980] sm:$0xf]
    %v982 = vld [vmem:[%s980 + $0x4] sm:$0xf]
    %v983 = vld [vmem:[%s980 + $0x8] sm:$0xf]
    %v984 = vld [vmem:[%s980 + $0xc] sm:$0xf]
    %v985 = vld [vmem:[%s980 + $0x10] sm:$0xf]
    %v986 = vld [vmem:[%s980 + $0x14] sm:$0xf]
    %v987 = vld [vmem:[%s980 + $0x18] sm:$0xf]
    %v988 = vld [vmem:[%s980 + $0x1c] sm:$0xf]
    %v989 = vld [vmem:[%s980 + $0x20] sm:$0xf]
    %v990 = vld [vmem:[%s980 + $0x24] sm:$0xf]
    %v991 = vld [vmem:[%s980 + $0x28] sm:$0xf]
    %v992 = vld [vmem:[%s980 + $0x2c] sm:$0xf]
    %v993 = vld [vmem:[%s980 + $0x30] sm:$0xf]
    %v994 = vld [vmem:[%s980 + $0x34] sm:$0xf]
    %v995 = vld [vmem:[%s980 + $0x38] sm:$0xf]
    %v996 = vld [vmem:[%s980 + $0x3c] sm:$0xf]
    %s997 = scalar_lea.vmem %s7, 3
    %v998 = vld [vmem:[%s997] sm:$0x1]
    %v1000 = vlaneseq
    %v1001 = vshrl.u32 %v1000, 7
    %v1002 = vsub.s32 0, %v1001
    %v1003 = vrot.slane %v998, %v1002
    %v1021 = vunpack.c.l.b16 %v981
    %v1022 = vunpack.c.l.b16 %v982
    %v1023 = vunpack.c.l.b16 %v983
    %v1024 = vunpack.c.l.b16 %v984
    %v1025 = vunpack.c.l.b16 %v985
    %v1026 = vunpack.c.l.b16 %v986
    %v1027 = vunpack.c.l.b16 %v987
    %v1028 = vunpack.c.l.b16 %v988
    %v1029 = vunpack.c.l.b16 %v989
    %v1030 = vunpack.c.l.b16 %v990
    %v1031 = vunpack.c.l.b16 %v991
    %v1032 = vunpack.c.l.b16 %v992
    %v1033 = vunpack.c.l.b16 %v993
    %v1034 = vunpack.c.l.b16 %v994
    %v1035 = vunpack.c.l.b16 %v995
    %v1036 = vunpack.c.l.b16 %v996
    %v1037 = vpack.c.b16 %v1022, %v1021
    %v1038 = vpack.c.b16 %v1024, %v1023
    %v1039 = vpack.c.b16 %v1026, %v1025
    %v1040 = vpack.c.b16 %v1028, %v1027
    %v1041 = vpack.c.b16 %v1030, %v1029
    %v1042 = vpack.c.b16 %v1032, %v1031
    %v1043 = vpack.c.b16 %v1034, %v1033
    %v1044 = vpack.c.b16 %v1036, %v1035
    %1053 = vmatprep.subr.bf16.mxu0 0
    %1054 = vmatpush1.bf16.msra.mxu0 %v1037
    %1055 = vmatprep.subr.bf16.mxu0 0
    %1056 = vmatpush1.bf16.msra.mxu0 %v1038
    %1057 = vmatprep.subr.bf16.mxu0 0
    %1058 = vmatpush1.bf16.msra.mxu0 %v1039
    %1059 = vmatprep.subr.bf16.mxu0 0
    %1060 = vmatpush1.bf16.msra.mxu0 %v1040
    %1061 = vmatprep.subr.bf16.mxu0 0
    %1062 = vmatpush1.bf16.msra.mxu0 %v1041
    %1063 = vmatprep.subr.bf16.mxu0 0
    %1064 = vmatpush1.bf16.msra.mxu0 %v1042
    %1065 = vmatprep.subr.bf16.mxu0 0
    %1066 = vmatpush1.bf16.msra.mxu0 %v1043
    %1067 = vmatprep.subr.bf16.mxu0 0
    %1068 = vmatpush1.bf16.msra.mxu0 %v1044
    %1069 = vmatprep.subr.bf16.mxu0 0
    %1070 = vmatpush1.bf16.msra.mxu0 0
    %1071 = vmatprep.subr.bf16.mxu0 0
    %1072 = vmatpush1.bf16.msra.mxu0 0
    %1073 = vmatprep.subr.bf16.mxu0 0
    %1074 = vmatpush1.bf16.msra.mxu0 0
    %1075 = vmatprep.subr.bf16.mxu0 0
    %1076 = vmatpush1.bf16.msra.mxu0 0
    %1077 = vmatprep.subr.bf16.mxu0 0
    %1078 = vmatpush1.bf16.msra.mxu0 0
    %1079 = vmatprep.subr.bf16.mxu0 0
    %1080 = vmatpush1.bf16.msra.mxu0 0
    %1081 = vmatprep.subr.bf16.mxu0 0
    %1082 = vmatpush1.bf16.msra.mxu0 0
    %1083 = vmatprep.subr.bf16.mxu0 0
    %1084 = vmatpush1.bf16.msra.mxu0 0
    %1085 = vmatprep.mubr.bf16.mxu0 0
    %1086 = vmatmul.mubr.bf16.gmra.mrb[0].mxu0 %v979
    %v1087 = vpop.f32.mrb[0].mxu0
    %v1088 = vadd.f32 %v1003, %v1087
    %v1089 = vpop.f32.mrb[0].mxu0
    %v1090 = vpop.f32.mrb[0].mxu0
    %v1091 = vadd.f32 %v1003, %v1090
    %v1092 = vpop.f32.mrb[0].mxu0
    %1093 = vdwg.mxu0
    %v1094 = vtanh.pop %v1088
    %v1095 = vtanh.pop %v1091
    %v1096 = vmul.f32 %v1094, %v620
    %v1097 = vmul.f32 %v1095, %v621
    %v1098 = vpack.c.bf16 %v1097, %v1096
    %1099 = vmatprep.subr.bf16.mxu0 0
    %1100 = vmatpush1.bf16.msra.mxu0 %v680
    %1101 = vmatprep.subr.bf16.mxu0 0
    %1102 = vmatpush1.bf16.msra.mxu0 %v681
    %1103 = vmatprep.subr.bf16.mxu0 0
    %1104 = vmatpush1.bf16.msra.mxu0 %v682
    %1105 = vmatprep.subr.bf16.mxu0 0
    %1106 = vmatpush1.bf16.msra.mxu0 %v683
    %1107 = vmatprep.subr.bf16.mxu0 0
    %1108 = vmatpush1.bf16.msra.mxu0 %v684
    %1109 = vmatprep.subr.bf16.mxu0 0
    %1110 = vmatpush1.bf16.msra.mxu0 %v685
    %1111 = vmatprep.subr.bf16.mxu0 0
    %1112 = vmatpush1.bf16.msra.mxu0 %v686
    %1113 = vmatprep.subr.bf16.mxu0 0
    %1114 = vmatpush1.bf16.msra.mxu0 %v687
    %1115 = vmatprep.subr.bf16.mxu0 0
    %1116 = vmatpush1.bf16.msra.mxu0 0
    %1117 = vmatprep.subr.bf16.mxu0 0
    %1118 = vmatpush1.bf16.msra.mxu0 0
    %1119 = vmatprep.subr.bf16.mxu0 0
    %1120 = vmatpush1.bf16.msra.mxu0 0
    %1121 = vmatprep.subr.bf16.mxu0 0
    %1122 = vmatpush1.bf16.msra.mxu0 0
    %1123 = vmatprep.subr.bf16.mxu0 0
    %1124 = vmatpush1.bf16.msra.mxu0 0
    %1125 = vmatprep.subr.bf16.mxu0 0
    %1126 = vmatpush1.bf16.msra.mxu0 0
    %1127 = vmatprep.subr.bf16.mxu0 0
    %1128 = vmatpush1.bf16.msra.mxu0 0
    %1129 = vmatprep.subr.bf16.mxu0 0
    %1130 = vmatpush1.bf16.msra.mxu0 0
    %1131 = vmatprep.mubr.bf16.mxu0 0
    %1132 = vmatmul.mubr.bf16.gmra.mrb[0].mxu0 %v1098
    %v1133 = vpop.f32.mrb[0].mxu0
    %v1134 = vadd.f32 %v646, %v1133
    %v1135 = vpop.f32.mrb[0].mxu0
    %v1136 = vpop.f32.mrb[0].mxu0
    %v1137 = vadd.f32 %v646, %v1136
    %v1138 = vpop.f32.mrb[0].mxu0
    %1139 = vdwg.mxu0
    %v1140 = vtanh.pop %v1134
    %v1141 = vtanh.pop %v1137
    %v1142 = vmul.f32 %v1140, %v620
    %v1143 = vmul.f32 %v1141, %v621
    %v1144 = vpack.c.bf16 %v1143, %v1142
    %1145 = vmatprep.subr.bf16.mxu0 0
    %1146 = vmatpush1.bf16.msra.mxu0 %v799
    %1147 = vmatprep.subr.bf16.mxu0 0
    %1148 = vmatpush1.bf16.msra.mxu0 %v800
    %1149 = vmatprep.subr.bf16.mxu0 0
    %1150 = vmatpush1.bf16.msra.mxu0 %v801
    %1151 = vmatprep.subr.bf16.mxu0 0
    %1152 = vmatpush1.bf16.msra.mxu0 %v802
    %1153 = vmatprep.subr.bf16.mxu0 0
    %1154 = vmatpush1.bf16.msra.mxu0 %v803
    %1155 = vmatprep.subr.bf16.mxu0 0
    %1156 = vmatpush1.bf16.msra.mxu0 %v804
    %1157 = vmatprep.subr.bf16.mxu0 0
    %1158 = vmatpush1.bf16.msra.mxu0 %v805
    %1159 = vmatprep.subr.bf16.mxu0 0
    %1160 = vmatpush1.bf16.msra.mxu0 %v806
    %1161 = vmatprep.subr.bf16.mxu0 0
    %1162 = vmatpush1.bf16.msra.mxu0 0
    %1163 = vmatprep.subr.bf16.mxu0 0
    %1164 = vmatpush1.bf16.msra.mxu0 0
    %1165 = vmatprep.subr.bf16.mxu0 0
    %1166 = vmatpush1.bf16.msra.mxu0 0
    %1167 = vmatprep.subr.bf16.mxu0 0
    %1168 = vmatpush1.bf16.msra.mxu0 0
    %1169 = vmatprep.subr.bf16.mxu0 0
    %1170 = vmatpush1.bf16.msra.mxu0 0
    %1171 = vmatprep.subr.bf16.mxu0 0
    %1172 = vmatpush1.bf16.msra.mxu0 0
    %1173 = vmatprep.subr.bf16.mxu0 0
    %1174 = vmatpush1.bf16.msra.mxu0 0
    %1175 = vmatprep.subr.bf16.mxu0 0
    %1176 = vmatpush1.bf16.msra.mxu0 0
    %1177 = vmatprep.mubr.bf16.mxu0 0
    %1178 = vmatmul.mubr.bf16.gmra.mrb[0].mxu0 %v1144
    %v1179 = vpop.f32.mrb[0].mxu0
    %v1180 = vadd.f32 %v765, %v1179
    %v1181 = vpop.f32.mrb[0].mxu0
    %v1182 = vpop.f32.mrb[0].mxu0
    %v1183 = vadd.f32 %v765, %v1182
    %v1184 = vpop.f32.mrb[0].mxu0
    %1185 = vdwg.mxu0
    %v1186 = vtanh.pop %v1180
    %v1187 = vtanh.pop %v1183
    %v1188 = vmul.f32 %v1186, %v620
    %v1189 = vmul.f32 %v1187, %v621
    %v1190 = vpack.c.bf16 %v1189, %v1188
    %1191 = vmatprep.subr.bf16.mxu0 0
    %1192 = vmatpush1.bf16.msra.mxu0 %v918
    %1193 = vmatprep.subr.bf16.mxu0 0
    %1194 = vmatpush1.bf16.msra.mxu0 %v919
    %1195 = vmatprep.subr.bf16.mxu0 0
    %1196 = vmatpush1.bf16.msra.mxu0 %v920
    %1197 = vmatprep.subr.bf16.mxu0 0
    %1198 = vmatpush1.bf16.msra.mxu0 %v921
    %1199 = vmatprep.subr.bf16.mxu0 0
    %1200 = vmatpush1.bf16.msra.mxu0 %v922
    %1201 = vmatprep.subr.bf16.mxu0 0
    %1202 = vmatpush1.bf16.msra.mxu0 %v923
    %1203 = vmatprep.subr.bf16.mxu0 0
    %1204 = vmatpush1.bf16.msra.mxu0 %v924
    %1205 = vmatprep.subr.bf16.mxu0 0
    %1206 = vmatpush1.bf16.msra.mxu0 %v925
    %1207 = vmatprep.subr.bf16.mxu0 0
    %1208 = vmatpush1.bf16.msra.mxu0 0
    %1209 = vmatprep.subr.bf16.mxu0 0
    %1210 = vmatpush1.bf16.msra.mxu0 0
    %1211 = vmatprep.subr.bf16.mxu0 0
    %1212 = vmatpush1.bf16.msra.mxu0 0
    %1213 = vmatprep.subr.bf16.mxu0 0
    %1214 = vmatpush1.bf16.msra.mxu0 0
    %1215 = vmatprep.subr.bf16.mxu0 0
    %1216 = vmatpush1.bf16.msra.mxu0 0
    %1217 = vmatprep.subr.bf16.mxu0 0
    %1218 = vmatpush1.bf16.msra.mxu0 0
    %1219 = vmatprep.subr.bf16.mxu0 0
    %1220 = vmatpush1.bf16.msra.mxu0 0
    %1221 = vmatprep.subr.bf16.mxu0 0
    %1222 = vmatpush1.bf16.msra.mxu0 0
    %1223 = vmatprep.mubr.bf16.mxu0 0
    %1224 = vmatmul.mubr.bf16.gmra.mrb[0].mxu0 %v1190
    %v1225 = vpop.f32.mrb[0].mxu0
    %v1226 = vadd.f32 %v884, %v1225
    %v1227 = vpop.f32.mrb[0].mxu0
    %v1228 = vpop.f32.mrb[0].mxu0
    %v1229 = vadd.f32 %v884, %v1228
    %v1230 = vpop.f32.mrb[0].mxu0
    %1231 = vdwg.mxu0
    %v1232 = vtanh.pop %v1226
    %v1233 = vtanh.pop %v1229
    %v1234 = vmul.f32 %v1232, %v620
    %v1235 = vmul.f32 %v1233, %v621
    %v1236 = vpack.c.bf16 %v1235, %v1234
    %1237 = vmatprep.subr.bf16.mxu0 0
    %1238 = vmatpush1.bf16.msra.mxu0 %v1037
    %1239 = vmatprep.subr.bf16.mxu0 0
    %1240 = vmatpush1.bf16.msra.mxu0 %v1038
    %1241 = vmatprep.subr.bf16.mxu0 0
    %1242 = vmatpush1.bf16.msra.mxu0 %v1039
    %1243 = vmatprep.subr.bf16.mxu0 0
    %1244 = vmatpush1.bf16.msra.mxu0 %v1040
    %1245 = vmatprep.subr.bf16.mxu0 0
    %1246 = vmatpush1.bf16.msra.mxu0 %v1041
    %1247 = vmatprep.subr.bf16.mxu0 0
    %1248 = vmatpush1.bf16.msra.mxu0 %v1042
    %1249 = vmatprep.subr.bf16.mxu0 0
    %1250 = vmatpush1.bf16.msra.mxu0 %v1043
    %1251 = vmatprep.subr.bf16.mxu0 0
    %1252 = vmatpush1.bf16.msra.mxu0 %v1044
    %1253 = vmatprep.subr.bf16.mxu0 0
    %1254 = vmatpush1.bf16.msra.mxu0 0
    %1255 = vmatprep.subr.bf16.mxu0 0
    %1256 = vmatpush1.bf16.msra.mxu0 0
    %1257 = vmatprep.subr.bf16.mxu0 0
    %1258 = vmatpush1.bf16.msra.mxu0 0
    %1259 = vmatprep.subr.bf16.mxu0 0
    %1260 = vmatpush1.bf16.msra.mxu0 0
    %1261 = vmatprep.subr.bf16.mxu0 0
    %1262 = vmatpush1.bf16.msra.mxu0 0
    %1263 = vmatprep.subr.bf16.mxu0 0
    %1264 = vmatpush1.bf16.msra.mxu0 0
    %1265 = vmatprep.subr.bf16.mxu0 0
    %1266 = vmatpush1.bf16.msra.mxu0 0
    %1267 = vmatprep.subr.bf16.mxu0 0
    %1268 = vmatpush1.bf16.msra.mxu0 0
    %1269 = vmatprep.mubr.bf16.mxu0 0
    %1270 = vmatmul.mubr.bf16.gmra.mrb[0].mxu0 %v1236
    %v1271 = vpop.f32.mrb[0].mxu0
    %v1272 = vadd.f32 %v1003, %v1271
    %v1273 = vpop.f32.mrb[0].mxu0
    %v1274 = vpop.f32.mrb[0].mxu0
    %v1275 = vadd.f32 %v1003, %v1274
    %v1276 = vpop.f32.mrb[0].mxu0
    %1277 = vdwg.mxu0
    %v1278 = vtanh.pop %v1272
    %v1279 = vtanh.pop %v1275
    %v1280 = vmul.f32 %v1278, %v620
    %v1281 = vmul.f32 %v1279, %v621
    %v1282 = vpack.c.bf16 %v1281, %v1280
    %1283 = vmatprep.subr.bf16.mxu0 0
    %1284 = vmatpush1.bf16.msra.mxu0 %v680
    %1285 = vmatprep.subr.bf16.mxu0 0
    %1286 = vmatpush1.bf16.msra.mxu0 %v681
    %1287 = vmatprep.subr.bf16.mxu0 0
    %1288 = vmatpush1.bf16.msra.mxu0 %v682
    %1289 = vmatprep.subr.bf16.mxu0 0
    %1290 = vmatpush1.bf16.msra.mxu0 %v683
    %1291 = vmatprep.subr.bf16.mxu0 0
    %1292 = vmatpush1.bf16.msra.mxu0 %v684
    %1293 = vmatprep.subr.bf16.mxu0 0
    %1294 = vmatpush1.bf16.msra.mxu0 %v685
    %1295 = vmatprep.subr.bf16.mxu0 0
    %1296 = vmatpush1.bf16.msra.mxu0 %v686
    %1297 = vmatprep.subr.bf16.mxu0 0
    %1298 = vmatpush1.bf16.msra.mxu0 %v687
    %1299 = vmatprep.subr.bf16.mxu0 0
    %1300 = vmatpush1.bf16.msra.mxu0 0
    %1301 = vmatprep.subr.bf16.mxu0 0
    %1302 = vmatpush1.bf16.msra.mxu0 0
    %1303 = vmatprep.subr.bf16.mxu0 0
    %1304 = vmatpush1.bf16.msra.mxu0 0
    %1305 = vmatprep.subr.bf16.mxu0 0
    %1306 = vmatpush1.bf16.msra.mxu0 0
    %1307 = vmatprep.subr.bf16.mxu0 0
    %1308 = vmatpush1.bf16.msra.mxu0 0
    %1309 = vmatprep.subr.bf16.mxu0 0
    %1310 = vmatpush1.bf16.msra.mxu0 0
    %1311 = vmatprep.subr.bf16.mxu0 0
    %1312 = vmatpush1.bf16.msra.mxu0 0
    %1313 = vmatprep.subr.bf16.mxu0 0
    %1314 = vmatpush1.bf16.msra.mxu0 0
    %1315 = vmatprep.mubr.bf16.mxu0 0
    %1316 = vmatmul.mubr.bf16.gmra.mrb[0].mxu0 %v1282
    %v1317 = vpop.f32.mrb[0].mxu0
    %v1318 = vadd.f32 %v646, %v1317
    %v1319 = vpop.f32.mrb[0].mxu0
    %v1320 = vpop.f32.mrb[0].mxu0
    %v1321 = vadd.f32 %v646, %v1320
    %v1322 = vpop.f32.mrb[0].mxu0
    %1323 = vdwg.mxu0
    %v1324 = vtanh.pop %v1318
    %v1325 = vtanh.pop %v1321
    %v1326 = vmul.f32 %v1324, %v620
    %v1327 = vmul.f32 %v1325, %v621
    %v1328 = vpack.c.bf16 %v1327, %v1326
    %1329 = vmatprep.subr.bf16.mxu0 0
    %1330 = vmatpush1.bf16.msra.mxu0 %v799
    %1331 = vmatprep.subr.bf16.mxu0 0
    %1332 = vmatpush1.bf16.msra.mxu0 %v800
    %1333 = vmatprep.subr.bf16.mxu0 0
    %1334 = vmatpush1.bf16.msra.mxu0 %v801
    %1335 = vmatprep.subr.bf16.mxu0 0
    %1336 = vmatpush1.bf16.msra.mxu0 %v802
    %1337 = vmatprep.subr.bf16.mxu0 0
    %1338 = vmatpush1.bf16.msra.mxu0 %v803
    %1339 = vmatprep.subr.bf16.mxu0 0
    %1340 = vmatpush1.bf16.msra.mxu0 %v804
    %1341 = vmatprep.subr.bf16.mxu0 0
    %1342 = vmatpush1.bf16.msra.mxu0 %v805
    %1343 = vmatprep.subr.bf16.mxu0 0
    %1344 = vmatpush1.bf16.msra.mxu0 %v806
    %1345 = vmatprep.subr.bf16.mxu0 0
    %1346 = vmatpush1.bf16.msra.mxu0 0
    %1347 = vmatprep.subr.bf16.mxu0 0
    %1348 = vmatpush1.bf16.msra.mxu0 0
    %1349 = vmatprep.subr.bf16.mxu0 0
    %1350 = vmatpush1.bf16.msra.mxu0 0
    %1351 = vmatprep.subr.bf16.mxu0 0
    %1352 = vmatpush1.bf16.msra.mxu0 0
    %1353 = vmatprep.subr.bf16.mxu0 0
    %1354 = vmatpush1.bf16.msra.mxu0 0
    %1355 = vmatprep.subr.bf16.mxu0 0
    %1356 = vmatpush1.bf16.msra.mxu0 0
    %1357 = vmatprep.subr.bf16.mxu0 0
    %1358 = vmatpush1.bf16.msra.mxu0 0
    %1359 = vmatprep.subr.bf16.mxu0 0
    %1360 = vmatpush1.bf16.msra.mxu0 0
    %1361 = vmatprep.mubr.bf16.mxu0 0
    %1362 = vmatmul.mubr.bf16.gmra.mrb[0].mxu0 %v1328
    %v1363 = vpop.f32.mrb[0].mxu0
    %v1364 = vadd.f32 %v765, %v1363
    %v1365 = vpop.f32.mrb[0].mxu0
    %v1366 = vpop.f32.mrb[0].mxu0
    %v1367 = vadd.f32 %v765, %v1366
    %v1368 = vpop.f32.mrb[0].mxu0
    %1369 = vdwg.mxu0
    %v1370 = vtanh.pop %v1364
    %v1371 = vtanh.pop %v1367
    %v1372 = vmul.f32 %v1370, %v620
    %v1373 = vmul.f32 %v1371, %v621
    %v1374 = vpack.c.bf16 %v1373, %v1372
    %1375 = vmatprep.subr.bf16.mxu0 0
    %1376 = vmatpush1.bf16.msra.mxu0 %v918
    %1377 = vmatprep.subr.bf16.mxu0 0
    %1378 = vmatpush1.bf16.msra.mxu0 %v919
    %1379 = vmatprep.subr.bf16.mxu0 0
    %1380 = vmatpush1.bf16.msra.mxu0 %v920
    %1381 = vmatprep.subr.bf16.mxu0 0
    %1382 = vmatpush1.bf16.msra.mxu0 %v921
    %1383 = vmatprep.subr.bf16.mxu0 0
    %1384 = vmatpush1.bf16.msra.mxu0 %v922
    %1385 = vmatprep.subr.bf16.mxu0 0
    %1386 = vmatpush1.bf16.msra.mxu0 %v923
    %1387 = vmatprep.subr.bf16.mxu0 0
    %1388 = vmatpush1.bf16.msra.mxu0 %v924
    %1389 = vmatprep.subr.bf16.mxu0 0
    %1390 = vmatpush1.bf16.msra.mxu0 %v925
    %1391 = vmatprep.subr.bf16.mxu0 0
    %1392 = vmatpush1.bf16.msra.mxu0 0
    %1393 = vmatprep.subr.bf16.mxu0 0
    %1394 = vmatpush1.bf16.msra.mxu0 0
    %1395 = vmatprep.subr.bf16.mxu0 0
    %1396 = vmatpush1.bf16.msra.mxu0 0
    %1397 = vmatprep.subr.bf16.mxu0 0
    %1398 = vmatpush1.bf16.msra.mxu0 0
    %1399 = vmatprep.subr.bf16.mxu0 0
    %1400 = vmatpush1.bf16.msra.mxu0 0
    %1401 = vmatprep.subr.bf16.mxu0 0
    %1402 = vmatpush1.bf16.msra.mxu0 0
    %1403 = vmatprep.subr.bf16.mxu0 0
    %1404 = vmatpush1.bf16.msra.mxu0 0
    %1405 = vmatprep.subr.bf16.mxu0 0
    %1406 = vmatpush1.bf16.msra.mxu0 0
    %1407 = vmatprep.mubr.bf16.mxu0 0
    %1408 = vmatmul.mubr.bf16.gmra.mrb[0].mxu0 %v1374
    %v1409 = vpop.f32.mrb[0].mxu0
    %v1410 = vadd.f32 %v884, %v1409
    %v1411 = vpop.f32.mrb[0].mxu0
    %v1412 = vpop.f32.mrb[0].mxu0
    %v1413 = vadd.f32 %v884, %v1412
    %v1414 = vpop.f32.mrb[0].mxu0
    %1415 = vdwg.mxu0
    %v1416 = vtanh.pop %v1410
    %v1417 = vtanh.pop %v1413
    %v1418 = vmul.f32 %v1416, %v620
    %v1419 = vmul.f32 %v1417, %v621
    %v1420 = vpack.c.bf16 %v1419, %v1418
    %1421 = vmatprep.subr.bf16.mxu0 0
    %1422 = vmatpush1.bf16.msra.mxu0 %v1037
    %1423 = vmatprep.subr.bf16.mxu0 0
    %1424 = vmatpush1.bf16.msra.mxu0 %v1038
    %1425 = vmatprep.subr.bf16.mxu0 0
    %1426 = vmatpush1.bf16.msra.mxu0 %v1039
    %1427 = vmatprep.subr.bf16.mxu0 0
    %1428 = vmatpush1.bf16.msra.mxu0 %v1040
    %1429 = vmatprep.subr.bf16.mxu0 0
    %1430 = vmatpush1.bf16.msra.mxu0 %v1041
    %1431 = vmatprep.subr.bf16.mxu0 0
    %1432 = vmatpush1.bf16.msra.mxu0 %v1042
    %1433 = vmatprep.subr.bf16.mxu0 0
    %1434 = vmatpush1.bf16.msra.mxu0 %v1043
    %1435 = vmatprep.subr.bf16.mxu0 0
    %1436 = vmatpush1.bf16.msra.mxu0 %v1044
    %1437 = vmatprep.subr.bf16.mxu0 0
    %1438 = vmatpush1.bf16.msra.mxu0 0
    %1439 = vmatprep.subr.bf16.mxu0 0
    %1440 = vmatpush1.bf16.msra.mxu0 0
    %1441 = vmatprep.subr.bf16.mxu0 0
    %1442 = vmatpush1.bf16.msra.mxu0 0
    %1443 = vmatprep.subr.bf16.mxu0 0
    %1444 = vmatpush1.bf16.msra.mxu0 0
    %1445 = vmatprep.subr.bf16.mxu0 0
    %1446 = vmatpush1.bf16.msra.mxu0 0
    %1447 = vmatprep.subr.bf16.mxu0 0
    %1448 = vmatpush1.bf16.msra.mxu0 0
    %1449 = vmatprep.subr.bf16.mxu0 0
    %1450 = vmatpush1.bf16.msra.mxu0 0
    %1451 = vmatprep.subr.bf16.mxu0 0
    %1452 = vmatpush1.bf16.msra.mxu0 0
    %1453 = vmatprep.mubr.bf16.mxu0 0
    %1454 = vmatmul.mubr.bf16.gmra.mrb[0].mxu0 %v1420
    %v1455 = vpop.f32.mrb[0].mxu0
    %v1456 = vadd.f32 %v1003, %v1455
    %v1457 = vpop.f32.mrb[0].mxu0
    %v1458 = vpop.f32.mrb[0].mxu0
    %v1459 = vadd.f32 %v1003, %v1458
    %v1460 = vpop.f32.mrb[0].mxu0
    %1461 = vdwg.mxu0
    %v1462 = vtanh.pop %v1456
    %v1463 = vtanh.pop %v1459
    %v1464 = vmul.f32 %v1462, %v620
    %v1465 = vmul.f32 %v1463, %v621
    %v1466 = vpack.c.bf16 %v1465, %v1464
    %1467 = vmatprep.subr.bf16.mxu0 0
    %1468 = vmatpush1.bf16.msra.mxu0 %v680
    %1469 = vmatprep.subr.bf16.mxu0 0
    %1470 = vmatpush1.bf16.msra.mxu0 %v681
    %1471 = vmatprep.subr.bf16.mxu0 0
    %1472 = vmatpush1.bf16.msra.mxu0 %v682
    %1473 = vmatprep.subr.bf16.mxu0 0
    %1474 = vmatpush1.bf16.msra.mxu0 %v683
    %1475 = vmatprep.subr.bf16.mxu0 0
    %1476 = vmatpush1.bf16.msra.mxu0 %v684
    %1477 = vmatprep.subr.bf16.mxu0 0
    %1478 = vmatpush1.bf16.msra.mxu0 %v685
    %1479 = vmatprep.subr.bf16.mxu0 0
    %1480 = vmatpush1.bf16.msra.mxu0 %v686
    %1481 = vmatprep.subr.bf16.mxu0 0
    %1482 = vmatpush1.bf16.msra.mxu0 %v687
    %1483 = vmatprep.subr.bf16.mxu0 0
    %1484 = vmatpush1.bf16.msra.mxu0 0
    %1485 = vmatprep.subr.bf16.mxu0 0
    %1486 = vmatpush1.bf16.msra.mxu0 0
    %1487 = vmatprep.subr.bf16.mxu0 0
    %1488 = vmatpush1.bf16.msra.mxu0 0
    %1489 = vmatprep.subr.bf16.mxu0 0
    %1490 = vmatpush1.bf16.msra.mxu0 0
    %1491 = vmatprep.subr.bf16.mxu0 0
    %1492 = vmatpush1.bf16.msra.mxu0 0
    %1493 = vmatprep.subr.bf16.mxu0 0
    %1494 = vmatpush1.bf16.msra.mxu0 0
    %1495 = vmatprep.subr.bf16.mxu0 0
    %1496 = vmatpush1.bf16.msra.mxu0 0
    %1497 = vmatprep.subr.bf16.mxu0 0
    %1498 = vmatpush1.bf16.msra.mxu0 0
    %1499 = vmatprep.mubr.bf16.mxu0 0
    %1500 = vmatmul.mubr.bf16.gmra.mrb[0].mxu0 %v1466
    %v1501 = vpop.f32.mrb[0].mxu0
    %v1502 = vadd.f32 %v646, %v1501
    %v1503 = vpop.f32.mrb[0].mxu0
    %v1504 = vpop.f32.mrb[0].mxu0
    %v1505 = vadd.f32 %v646, %v1504
    %v1506 = vpop.f32.mrb[0].mxu0
    %1507 = vdwg.mxu0
    %v1508 = vtanh.pop %v1502
    %v1509 = vtanh.pop %v1505
    %v1510 = vmul.f32 %v1508, %v620
    %v1511 = vmul.f32 %v1509, %v621
    %v1512 = vpack.c.bf16 %v1511, %v1510
    %1513 = vmatprep.subr.bf16.mxu0 0
    %1514 = vmatpush1.bf16.msra.mxu0 %v799
    %1515 = vmatprep.subr.bf16.mxu0 0
    %1516 = vmatpush1.bf16.msra.mxu0 %v800
    %1517 = vmatprep.subr.bf16.mxu0 0
    %1518 = vmatpush1.bf16.msra.mxu0 %v801
    %1519 = vmatprep.subr.bf16.mxu0 0
    %1520 = vmatpush1.bf16.msra.mxu0 %v802
    %1521 = vmatprep.subr.bf16.mxu0 0
    %1522 = vmatpush1.bf16.msra.mxu0 %v803
    %1523 = vmatprep.subr.bf16.mxu0 0
    %1524 = vmatpush1.bf16.msra.mxu0 %v804
    %1525 = vmatprep.subr.bf16.mxu0 0
    %1526 = vmatpush1.bf16.msra.mxu0 %v805
    %1527 = vmatprep.subr.bf16.mxu0 0
    %1528 = vmatpush1.bf16.msra.mxu0 %v806
    %1529 = vmatprep.subr.bf16.mxu0 0
    %1530 = vmatpush1.bf16.msra.mxu0 0
    %1531 = vmatprep.subr.bf16.mxu0 0
    %1532 = vmatpush1.bf16.msra.mxu0 0
    %1533 = vmatprep.subr.bf16.mxu0 0
    %1534 = vmatpush1.bf16.msra.mxu0 0
    %1535 = vmatprep.subr.bf16.mxu0 0
    %1536 = vmatpush1.bf16.msra.mxu0 0
    %1537 = vmatprep.subr.bf16.mxu0 0
    %1538 = vmatpush1.bf16.msra.mxu0 0
    %1539 = vmatprep.subr.bf16.mxu0 0
    %1540 = vmatpush1.bf16.msra.mxu0 0
    %1541 = vmatprep.subr.bf16.mxu0 0
    %1542 = vmatpush1.bf16.msra.mxu0 0
    %1543 = vmatprep.subr.bf16.mxu0 0
    %1544 = vmatpush1.bf16.msra.mxu0 0
    %1545 = vmatprep.mubr.bf16.mxu0 0
    %1546 = vmatmul.mubr.bf16.gmra.mrb[0].mxu0 %v1512
    %v1547 = vpop.f32.mrb[0].mxu0
    %v1548 = vadd.f32 %v765, %v1547
    %v1549 = vpop.f32.mrb[0].mxu0
    %v1550 = vpop.f32.mrb[0].mxu0
    %v1551 = vadd.f32 %v765, %v1550
    %v1552 = vpop.f32.mrb[0].mxu0
    %1553 = vdwg.mxu0
    %v1554 = vtanh.pop %v1548
    %v1555 = vtanh.pop %v1551
    %v1556 = vmul.f32 %v1554, %v620
    %v1557 = vmul.f32 %v1555, %v621
    %v1558 = vpack.c.bf16 %v1557, %v1556
    %1559 = vmatprep.subr.bf16.mxu0 0
    %1560 = vmatpush1.bf16.msra.mxu0 %v918
    %1561 = vmatprep.subr.bf16.mxu0 0
    %1562 = vmatpush1.bf16.msra.mxu0 %v919
    %1563 = vmatprep.subr.bf16.mxu0 0
    %1564 = vmatpush1.bf16.msra.mxu0 %v920
    %1565 = vmatprep.subr.bf16.mxu0 0
    %1566 = vmatpush1.bf16.msra.mxu0 %v921
    %1567 = vmatprep.subr.bf16.mxu0 0
    %1568 = vmatpush1.bf16.msra.mxu0 %v922
    %1569 = vmatprep.subr.bf16.mxu0 0
    %1570 = vmatpush1.bf16.msra.mxu0 %v923
    %1571 = vmatprep.subr.bf16.mxu0 0
    %1572 = vmatpush1.bf16.msra.mxu0 %v924
    %1573 = vmatprep.subr.bf16.mxu0 0
    %1574 = vmatpush1.bf16.msra.mxu0 %v925
    %1575 = vmatprep.subr.bf16.mxu0 0
    %1576 = vmatpush1.bf16.msra.mxu0 0
    %1577 = vmatprep.subr.bf16.mxu0 0
    %1578 = vmatpush1.bf16.msra.mxu0 0
    %1579 = vmatprep.subr.bf16.mxu0 0
    %1580 = vmatpush1.bf16.msra.mxu0 0
    %1581 = vmatprep.subr.bf16.mxu0 0
    %1582 = vmatpush1.bf16.msra.mxu0 0
    %1583 = vmatprep.subr.bf16.mxu0 0
    %1584 = vmatpush1.bf16.msra.mxu0 0
    %1585 = vmatprep.subr.bf16.mxu0 0
    %1586 = vmatpush1.bf16.msra.mxu0 0
    %1587 = vmatprep.subr.bf16.mxu0 0
    %1588 = vmatpush1.bf16.msra.mxu0 0
    %1589 = vmatprep.subr.bf16.mxu0 0
    %1590 = vmatpush1.bf16.msra.mxu0 0
    %1591 = vmatprep.mubr.bf16.mxu0 0
    %1592 = vmatmul.mubr.bf16.gmra.mrb[0].mxu0 %v1558
    %v1593 = vpop.f32.mrb[0].mxu0
    %v1594 = vadd.f32 %v884, %v1593
    %v1595 = vpop.f32.mrb[0].mxu0
    %v1596 = vpop.f32.mrb[0].mxu0
    %v1597 = vadd.f32 %v884, %v1596
    %v1598 = vpop.f32.mrb[0].mxu0
    %1599 = vdwg.mxu0
    %v1600 = vtanh.pop %v1594
    %v1601 = vtanh.pop %v1597
    %v1602 = vmul.f32 %v1600, %v620
    %v1603 = vmul.f32 %v1601, %v621
    %v1604 = vpack.c.bf16 %v1603, %v1602
    %1605 = vmatprep.subr.bf16.mxu0 0
    %1606 = vmatpush1.bf16.msra.mxu0 %v1037
    %1607 = vmatprep.subr.bf16.mxu0 0
    %1608 = vmatpush1.bf16.msra.mxu0 %v1038
    %1609 = vmatprep.subr.bf16.mxu0 0
    %1610 = vmatpush1.bf16.msra.mxu0 %v1039
    %1611 = vmatprep.subr.bf16.mxu0 0
    %1612 = vmatpush1.bf16.msra.mxu0 %v1040
    %1613 = vmatprep.subr.bf16.mxu0 0
    %1614 = vmatpush1.bf16.msra.mxu0 %v1041
    %1615 = vmatprep.subr.bf16.mxu0 0
    %1616 = vmatpush1.bf16.msra.mxu0 %v1042
    %1617 = vmatprep.subr.bf16.mxu0 0
    %1618 = vmatpush1.bf16.msra.mxu0 %v1043
    %1619 = vmatprep.subr.bf16.mxu0 0
    %1620 = vmatpush1.bf16.msra.mxu0 %v1044
    %1621 = vmatprep.subr.bf16.mxu0 0
    %1622 = vmatpush1.bf16.msra.mxu0 0
    %1623 = vmatprep.subr.bf16.mxu0 0
    %1624 = vmatpush1.bf16.msra.mxu0 0
    %1625 = vmatprep.subr.bf16.mxu0 0
    %1626 = vmatpush1.bf16.msra.mxu0 0
    %1627 = vmatprep.subr.bf16.mxu0 0
    %1628 = vmatpush1.bf16.msra.mxu0 0
    %1629 = vmatprep.subr.bf16.mxu0 0
    %1630 = vmatpush1.bf16.msra.mxu0 0
    %1631 = vmatprep.subr.bf16.mxu0 0
    %1632 = vmatpush1.bf16.msra.mxu0 0
    %1633 = vmatprep.subr.bf16.mxu0 0
    %1634 = vmatpush1.bf16.msra.mxu0 0
    %1635 = vmatprep.subr.bf16.mxu0 0
    %1636 = vmatpush1.bf16.msra.mxu0 0
    %1637 = vmatprep.mubr.bf16.mxu0 0
    %1638 = vmatmul.mubr.bf16.gmra.mrb[0].mxu0 %v1604
    %v1639 = vpop.f32.mrb[0].mxu0
    %v1640 = vadd.f32 %v1003, %v1639
    %v1641 = vpop.f32.mrb[0].mxu0
    %v1642 = vpop.f32.mrb[0].mxu0
    %v1643 = vadd.f32 %v1003, %v1642
    %v1644 = vpop.f32.mrb[0].mxu0
    %1645 = vdwg.mxu0
    %v1646 = vtanh.pop %v1640
    %v1647 = vtanh.pop %v1643
    %1648 = vst [vmem:[#allocation15] sm:$0xff] %v1646
    %1649 = vst [vmem:[#allocation15 + $0x8] sm:$0xff] %v1647
    %v1650 = vpack.c.bf16 %v1647, %v1646
    %v1651 = vld [vmem:[#allocation13] sm:$0xff]
    %v1652 = vld [vmem:[#allocation13 + $0x8] sm:$0xff]
    %v1653 = vld [vmem:[#allocation13 + $0x10] sm:$0xff]
    %v1654 = vld [vmem:[#allocation13 + $0x18] sm:$0xff]
    %v1655 = vld [vmem:[#allocation13 + $0x20] sm:$0xff]
    %v1656 = vld [vmem:[#allocation13 + $0x28] sm:$0xff]
    %v1657 = vld [vmem:[#allocation13 + $0x30] sm:$0xff]
    %v1658 = vld [vmem:[#allocation13 + $0x38] sm:$0xff]
    %v1659 = vld [vmem:[#allocation13 + $0x40] sm:$0xff]
    %v1660 = vld [vmem:[#allocation13 + $0x48] sm:$0xff]
    %v1661 = vld [vmem:[#allocation13 + $0x50] sm:$0xff]
    %v1662 = vld [vmem:[#allocation13 + $0x58] sm:$0xff]
    %v1663 = vld [vmem:[#allocation13 + $0x60] sm:$0xff]
    %v1664 = vld [vmem:[#allocation13 + $0x68] sm:$0xff]
    %v1665 = vld [vmem:[#allocation13 + $0x70] sm:$0xff]
    %v1666 = vld [vmem:[#allocation13 + $0x78] sm:$0xff]
    %v1667 = vld [vmem:[%s9] sm:$0x3]
    %v1669 = vlaneseq
    %v1670 = vshrl.u32 %v1669, 7
    %v1671 = vsub.s32 0, %v1670
    %v1672 = vrot.slane %v1667, %v1671
    %v1673 = vlaneseq
    %v1674 = vshrl.u32 %v1673, 7
    %v1675 = vsub.s32 1, %v1674
    %v1676 = vrot.slane %v1667, %v1675
    %v1695 = vunpack.c.l.b16 %v1651
    %v1696 = vunpack.c.h.b16 %v1651
    %v1697 = vunpack.c.l.b16 %v1652
    %v1698 = vunpack.c.h.b16 %v1652
    %v1699 = vunpack.c.l.b16 %v1653
    %v1700 = vunpack.c.h.b16 %v1653
    %v1701 = vunpack.c.l.b16 %v1654
    %v1702 = vunpack.c.h.b16 %v1654
    %v1703 = vunpack.c.l.b16 %v1655
    %v1704 = vunpack.c.h.b16 %v1655
    %v1705 = vunpack.c.l.b16 %v1656
    %v1706 = vunpack.c.h.b16 %v1656
    %v1707 = vunpack.c.l.b16 %v1657
    %v1708 = vunpack.c.h.b16 %v1657
    %v1709 = vunpack.c.l.b16 %v1658
    %v1710 = vunpack.c.h.b16 %v1658
    %v1711 = vunpack.c.l.b16 %v1659
    %v1712 = vunpack.c.h.b16 %v1659
    %v1713 = vunpack.c.l.b16 %v1660
    %v1714 = vunpack.c.h.b16 %v1660
    %v1715 = vunpack.c.l.b16 %v1661
    %v1716 = vunpack.c.h.b16 %v1661
    %v1717 = vunpack.c.l.b16 %v1662
    %v1718 = vunpack.c.h.b16 %v1662
    %v1719 = vunpack.c.l.b16 %v1663
    %v1720 = vunpack.c.h.b16 %v1663
    %v1721 = vunpack.c.l.b16 %v1664
    %v1722 = vunpack.c.h.b16 %v1664
    %v1723 = vunpack.c.l.b16 %v1665
    %v1724 = vunpack.c.h.b16 %v1665
    %v1725 = vunpack.c.l.b16 %v1666
    %v1726 = vunpack.c.h.b16 %v1666
    %v1727 = vpack.c.b16 %v1697, %v1695
    %v1728 = vpack.c.b16 %v1698, %v1696
    %v1729 = vpack.c.b16 %v1701, %v1699
    %v1730 = vpack.c.b16 %v1702, %v1700
    %v1731 = vpack.c.b16 %v1705, %v1703
    %v1732 = vpack.c.b16 %v1706, %v1704
    %v1733 = vpack.c.b16 %v1709, %v1707
    %v1734 = vpack.c.b16 %v1710, %v1708
    %v1735 = vpack.c.b16 %v1713, %v1711
    %v1736 = vpack.c.b16 %v1714, %v1712
    %v1737 = vpack.c.b16 %v1717, %v1715
    %v1738 = vpack.c.b16 %v1718, %v1716
    %v1739 = vpack.c.b16 %v1721, %v1719
    %v1740 = vpack.c.b16 %v1722, %v1720
    %v1741 = vpack.c.b16 %v1725, %v1723
    %v1742 = vpack.c.b16 %v1726, %v1724
    %1759 = vmatprep.subr.bf16.mxu0 %v1728
    %1760 = vmatpush1.bf16.msra.mxu0 %v1727
    %1761 = vmatprep.subr.bf16.mxu0 %v1730
    %1762 = vmatpush1.bf16.msra.mxu0 %v1729
    %1763 = vmatprep.subr.bf16.mxu0 %v1732
    %1764 = vmatpush1.bf16.msra.mxu0 %v1731
    %1765 = vmatprep.subr.bf16.mxu0 %v1734
    %1766 = vmatpush1.bf16.msra.mxu0 %v1733
    %1767 = vmatprep.subr.bf16.mxu0 %v1736
    %1768 = vmatpush1.bf16.msra.mxu0 %v1735
    %1769 = vmatprep.subr.bf16.mxu0 %v1738
    %1770 = vmatpush1.bf16.msra.mxu0 %v1737
    %1771 = vmatprep.subr.bf16.mxu0 %v1740
    %1772 = vmatpush1.bf16.msra.mxu0 %v1739
    %1773 = vmatprep.subr.bf16.mxu0 %v1742
    %1774 = vmatpush1.bf16.msra.mxu0 %v1741
    %1775 = vmatprep.subr.bf16.mxu0 0
    %1776 = vmatpush1.bf16.msra.mxu0 0
    %1777 = vmatprep.subr.bf16.mxu0 0
    %1778 = vmatpush1.bf16.msra.mxu0 0
    %1779 = vmatprep.subr.bf16.mxu0 0
    %1780 = vmatpush1.bf16.msra.mxu0 0
    %1781 = vmatprep.subr.bf16.mxu0 0
    %1782 = vmatpush1.bf16.msra.mxu0 0
    %1783 = vmatprep.subr.bf16.mxu0 0
    %1784 = vmatpush1.bf16.msra.mxu0 0
    %1785 = vmatprep.subr.bf16.mxu0 0
    %1786 = vmatpush1.bf16.msra.mxu0 0
    %1787 = vmatprep.subr.bf16.mxu0 0
    %1788 = vmatpush1.bf16.msra.mxu0 0
    %1789 = vmatprep.subr.bf16.mxu0 0
    %1790 = vmatpush1.bf16.msra.mxu0 0
    %1791 = vmatprep.mubr.bf16.mxu0 0
    %1792 = vmatmul.mubr.bf16.gmra.mrb[0].mxu0 %v1650
    %v1793 = vpop.f32.mrb[0].mxu0
    %v1794 = vadd.f32 %v1672, %v1793
    %v1795 = vpop.f32.mrb[0].mxu0
    %v1796 = vadd.f32 %v1676, %v1795
    %v1797 = vpop.f32.mrb[0].mxu0
    %v1798 = vadd.f32 %v1672, %v1797
    %v1799 = vpop.f32.mrb[0].mxu0
    %v1800 = vadd.f32 %v1676, %v1799
    %1801 = vdwg.mxu0
    %1802 = vst [vmem:[#allocation17] sm:$0xff] %v1794
    %1803 = vst [vmem:[#allocation17 + $0x8] sm:$0xff] %v1798
    %1804 = vst [vmem:[#allocation18] sm:$0xff] %v1796
    %1805 = vst [vmem:[#allocation18 + $0x8] sm:$0xff] %v1800
    // Predicated region
    $region70: #{tpu_custom_call.1} parent=1 // pred_check
      _
    $region71: #{tpu_custom_call.1} parent=1 // pred_check_branch
      %1807 = sbr.rel (0) target = $region73
    $region72: #{tpu_custom_call.1} parent=1 // pred_region
      %s1809 = ssub.s32 256, 256
      %1810 = vsyncadd [#allocation4], %s1809
      %s1811 = sshll.u32 [#allocation14], 4
      %s1812 = int_to_ptr.vmem [resolvable:$true] %s1811
      %1817 = dma.vmem_to_hbm [thread:$0]  %s1812, 256, %s10, [#allocation4], 128, 128, 8
    $region73: #{tpu_custom_call.1} parent=1 // pred_fallthru
      _
    // Predicated region
    $region74: #{tpu_custom_call.1} parent=1 // pred_check
      _
    $region75: #{tpu_custom_call.1} parent=1 // pred_check_branch
      %1819 = sbr.rel (0) target = $region77
    $region76: #{tpu_custom_call.1} parent=1 // pred_region
      %s1821 = ssub.s32 256, 256
      %1822 = vsyncadd [#allocation16], %s1821
      %s1823 = sshll.u32 [#allocation15], 4
      %s1824 = int_to_ptr.vmem [resolvable:$true] %s1823
      %1829 = dma.vmem_to_hbm [thread:$0]  %s1824, 256, %s11, [#allocation16], 128, 128, 8
    $region77: #{tpu_custom_call.1} parent=1 // pred_fallthru
      _
    // Predicated region
    $region78: #{tpu_custom_call.1} parent=1 // pred_check
      _
    $region79: #{tpu_custom_call.1} parent=1 // pred_check_branch
      %1831 = sbr.rel (0) target = $region81
    $region80: #{tpu_custom_call.1} parent=1 // pred_region
      %s1833 = ssub.s32 256, 256
      %1834 = vsyncadd [#allocation16], %s1833
      %s1835 = sshll.u32 [#allocation17], 4
      %s1836 = int_to_ptr.vmem [resolvable:$true] %s1835
      %1841 = dma.vmem_to_hbm [thread:$0]  %s1836, 256, %s12, [#allocation16], 128, 128, 8
    $region81: #{tpu_custom_call.1} parent=1 // pred_fallthru
      _
    // Predicated region
    $region82: #{tpu_custom_call.1} parent=1 // pred_check
      _
    $region83: #{tpu_custom_call.1} parent=1 // pred_check_branch
      %1843 = sbr.rel (0) target = $region85
    $region84: #{tpu_custom_call.1} parent=1 // pred_region
      %s1845 = ssub.s32 256, 256
      %1846 = vsyncadd [#allocation19], %s1845
      %s1847 = sshll.u32 [#allocation18], 4
      %s1848 = int_to_ptr.vmem [resolvable:$true] %s1847
      %1853 = dma.vmem_to_hbm [thread:$0]  %s1848, 256, %s13, [#allocation19], 128, 128, 8
    $region85: #{tpu_custom_call.1} parent=1 // pred_fallthru
      _
    // Predicated region
    $region86: #{tpu_custom_call.1} parent=1 // pred_check
      _
    $region87: #{tpu_custom_call.1} parent=1 // pred_check_branch
      %1855 = sbr.rel (0) target = $region89
    $region88: #{tpu_custom_call.1} parent=1 // pred_region
      %1856 = dma.done [#allocation4], 256
    $region89: #{tpu_custom_call.1} parent=1 // pred_fallthru
      _
    // Predicated region
    $region90: #{tpu_custom_call.1} parent=1 // pred_check
      _
    $region91: #{tpu_custom_call.1} parent=1 // pred_check_branch
      %1858 = sbr.rel (0) target = $region93
    $region92: #{tpu_custom_call.1} parent=1 // pred_region
      %1859 = dma.done [#allocation16], 256
    $region93: #{tpu_custom_call.1} parent=1 // pred_fallthru
      _
    // Predicated region
    $region94: #{tpu_custom_call.1} parent=1 // pred_check
      _
    $region95: #{tpu_custom_call.1} parent=1 // pred_check_branch
      %1861 = sbr.rel (0) target = $region97
    $region96: #{tpu_custom_call.1} parent=1 // pred_region
      %1862 = dma.done [#allocation16], 256
    $region97: #{tpu_custom_call.1} parent=1 // pred_fallthru
      _
    // Predicated region
    $region98: #{tpu_custom_call.1} parent=1 // pred_check
      _
    $region99: #{tpu_custom_call.1} parent=1 // pred_check_branch
      %1864 = sbr.rel (0) target = $region101
    $region100: #{tpu_custom_call.1} parent=1 // pred_region
      %1865 = dma.done [#allocation19], 256
    $region101: #{tpu_custom_call.1} parent=1 // pred_fallthru
      _
    %1866 = vsyncpa [#allocation3], 1
    %1867 = vsyncpa [#allocation6], 1
    %1868 = vsyncpa [#allocation9], 1
    %1869 = vsyncpa [#allocation12], 1
    %1870 = vsyncpa [#allocation4], 1
    %1871 = vsyncpa [#allocation16], 1
    %1872 = vsyncpa [#allocation19], 1

</llo_original>
